<compile_context>
chip_gen: v7x
topology: tpu7x:2x2x1
jax: 0.10.0
libtpu: 0.0.40
codegen_flags: <defaults>
</compile_context>

<pallas_src>
import functools

import jax
import jax.numpy as jnp
from jax import lax
from jax.experimental import pallas as pl
from jax.experimental.pallas import tpu as pltpu

_HALO_LANES = 128  # one 128-lane block carries a halo row (requires W <= 128)


def _round_up(x, m):
    return ((x + m - 1) // m) * m


def _fused_dw_pw_bn_relu_kernel(*refs, cin, cout, th, w, lead, has_halo):
    # refs (has_halo=True):  xb, xt, xbo, wf, b, out, ext
    # refs (has_halo=False): xb,          wf, b, out, ext
    #   xb  : (1, Cin, TH*W)   body rows, spatial flattened on the lane axis
    #   xt  : (1, Cin, 128)    block whose last W lanes are the row above the tile
    #   xbo : (1, Cin, 128)    block whose first W lanes are the row below the tile
    #   wf  : (Cout, 9*Cin)    folded  BNscale * pointwise * depthwise  weight
    #   b   : (Cout, 1)        folded BN bias (f32)
    #   out : (1, Cout, TH*W)
    #   ext : VMEM (Cin, lead + TH*W + W) scratch; body stored 128-lane aligned
    if has_halo:
        xb_ref, xt_ref, xbo_ref, wf_ref, b_ref, o_ref, ext_ref = refs
    else:
        xb_ref, wf_ref, b_ref, o_ref, ext_ref = refs
    thw = th * w
    cdt = ext_ref.dtype

    body = xb_ref[0]
    if body.dtype != cdt:
        body = body.astype(cdt)

    # ---- stage the two halo rows around a lane-aligned body copy ------------
    if has_halo:
        i = pl.program_id(1)
        nt = pl.num_programs(1)
        top = xt_ref[0][:, _HALO_LANES - w:].astype(cdt)   # (Cin, W) row above
        bot = xbo_ref[0][:, :w].astype(cdt)                # (Cin, W) row below
        top = top * (i > 0).astype(cdt)                    # zero above row 0
        bot = bot * (i < nt - 1).astype(cdt)               # zero below row H-1
        ext_ref[:, lead - w:lead] = top
        ext_ref[:, lead + thw:lead + thw + w] = bot
    else:
        zrow = jnp.zeros((cin, w), cdt)
        ext_ref[:, lead - w:lead] = zrow
        ext_ref[:, lead + thw:lead + thw + w] = zrow
    ext_ref[:, lead:lead + thw] = body                     # aligned, unmasked store

    # ---- lane masks guarding the kw = +/-1 taps against row wrap-around -----
    col = lax.broadcasted_iota(jnp.int32, (cin, thw), 1) % w
    mask_l = (col >= 1).astype(cdt)        # column offset -1 is valid
    mask_r = (col <= w - 2).astype(cdt)    # column offset +1 is valid

    # ---- 9 accumulating MXU matmuls (no im2col materialization) -------------
    acc = None
    k = 0
    for dh in (-1, 0, 1):
        if dh == 0:
            rows = body                                  # straight from input
        else:
            s = lead + dh * w
            rows = ext_ref[:, s:s + thw]                 # per-tap ref slice
        for dc in (-1, 0, 1):
            if dc == 0:
                tap = rows
            else:
                # column shift via XLU lane rotate; wrapped lanes masked to 0
                tap = pltpu.roll(rows, shift=(-dc) % thw, axis=1)
                tap = tap * (mask_l if dc == -1 else mask_r)
            part = jnp.dot(wf_ref[:, k * cin:(k + 1) * cin], tap,
                           preferred_element_type=jnp.float32)
            acc = part if acc is None else acc + part
            k += 1

    y = jnp.maximum(acc + b_ref[...], 0.0)               # BN shift + ReLU
    o_ref[0] = y.astype(o_ref.dtype)


def _auto_row_tile(H, W, Cin, Cout, in_b, out_b, cdt_b, budget=24 * 2 ** 20):
    """Largest TH dividing H whose double-buffered working set fits the budget."""
    lead = _round_up(W, 128)
    valid = []
    for th in range(1, H + 1):
        if H % th:
            continue
        thw = th * W
        if thw < 128:
            continue
        if H // th > 1 and (thw % 128 != 0 or W > 128):
            continue
        valid.append(th)
    if not valid:
        return H
    for th in sorted(valid, reverse=True):
        thw = th * W
        halo = 2 * Cin * _HALO_LANES * in_b if H // th > 1 else 0
        need = (2 * (Cin * thw * in_b + halo + Cout * thw * out_b)
                + Cin * (lead + thw + W) * cdt_b)
        if need <= budget:
            return th
    return valid[0]


def base_conv_dw(x, dw_weight, pw_weight, gamma, beta, running_mean,
                 running_var, eps=1e-5, row_tile=None, compute_dtype=None):
    """Fused BaseConvDW forward (eval-mode BN).

    x: (N, Cin, H, W) NCHW.  dw_weight: (Cin, 1, 3, 3).  pw_weight: (Cout, Cin, 1, 1).
    Returns (N, Cout, H, W) in x.dtype (bf16 in -> bf16 out keeps HBM I/O narrow).
    """
    N, Cin, H, W = x.shape
    Cout = pw_weight.shape[0]
    HW = H * W
    assert HW >= 128, "H*W must be >= 128 for the lane-dense layout"

    out_dtype = x.dtype
    if compute_dtype is None:
        # bf16 inputs -> bf16 MXU operands (native rate); f32 inputs stay exact.
        compute_dtype = jnp.bfloat16 if x.dtype == jnp.bfloat16 else jnp.float32
    compute_dtype = jnp.dtype(compute_dtype)
    in_b = x.dtype.itemsize
    out_b = jnp.dtype(out_dtype).itemsize
    cdt_b = compute_dtype.itemsize

    TH = _auto_row_tile(H, W, Cin, Cout, in_b, out_b, cdt_b) \
        if row_tile is None else int(row_tile)
    assert H % TH == 0, "row_tile must divide H"
    nt = H // TH
    THW = TH * W
    if nt > 1:
        assert THW % 128 == 0 and W <= 128, (
            "row tiling requires TH*W % 128 == 0 and W <= 128")
    has_halo = nt > 1
    lead = _round_up(W, 128)         # body starts 128-lane aligned inside ext
    ext_w = lead + THW + W

    # Fold depthwise * pointwise * BN-scale into one (Cout, 9*Cin) weight and
    # the BN mean/shift into a per-channel f32 bias (inference-mode BatchNorm).
    dwc = dw_weight[:, 0, :, :].astype(jnp.float32)              # (Cin, 3, 3)
    pw = pw_weight[:, :, 0, 0].astype(jnp.float32)               # (Cout, Cin)
    scale = gamma.astype(jnp.float32) / jnp.sqrt(
        running_var.astype(jnp.float32) + eps)
    bias = beta.astype(jnp.float32) - running_mean.astype(jnp.float32) * scale
    wf = jnp.einsum('oc,chw->ohwc', pw * scale[:, None], dwc)    # (Cout,3,3,Cin)
    wf = wf.reshape(Cout, 9 * Cin).astype(compute_dtype)
    bias = bias.reshape(Cout, 1)

    xf = x.reshape(N, Cin, HW)        # free reshape: spatial on the lane axis

    in_specs = [pl.BlockSpec((1, Cin, THW), lambda n, i: (n, 0, i))]
    operands = [xf]
    if has_halo:
        hb = THW // 128               # 128-lane blocks per row tile
        last_blk = HW // 128 - 1
        in_specs += [
            # 128-lane block ending where the tile starts (row above, clamped)
            pl.BlockSpec((1, Cin, _HALO_LANES),
                         lambda n, i: (n, 0, jnp.maximum(i * hb - 1, 0))),
            # 128-lane block starting where the tile ends (row below, clamped)
            pl.BlockSpec((1, Cin, _HALO_LANES),
                         lambda n, i: (n, 0, jnp.minimum((i + 1) * hb, last_blk))),
        ]
        operands += [xf, xf]
    in_specs += [
        pl.BlockSpec((Cout, 9 * Cin), lambda n, i: (0, 0)),
        pl.BlockSpec((Cout, 1), lambda n, i: (0, 0)),
    ]
    operands += [wf, bias]
    out_spec = pl.BlockSpec((1, Cout, THW), lambda n, i: (n, 0, i))

    flops = 2 * N * HW * Cout * 9 * Cin
    bytes_accessed = (N * Cin * HW * in_b + N * Cout * HW * out_b
                      + wf.size * cdt_b + bias.size * 4)

    halo_bytes = 2 * Cin * _HALO_LANES * in_b if has_halo else 0
    need = (2 * (Cin * THW * in_b + halo_bytes + Cout * THW * out_b)
            + Cin * ext_w * cdt_b + wf.size * cdt_b + Cout * 4 + (2 << 20))
    # cap well below v7x's 64 MiB/TC physical VMEM to keep compiler headroom
    vmem_limit = int(min(48 * 2 ** 20, max(16 * 2 ** 20, need)))

    kernel = functools.partial(_fused_dw_pw_bn_relu_kernel, cin=Cin, cout=Cout,
                               th=TH, w=W, lead=lead, has_halo=has_halo)
    out_flat = pl.pallas_call(
        kernel,
        out_shape=jax.ShapeDtypeStruct((N, Cout, HW), out_dtype),
        grid=(N, nt),
        in_specs=in_specs,
        out_specs=out_spec,
        scratch_shapes=[pltpu.VMEM((Cin, ext_w), compute_dtype)],
        compiler_params=pltpu.CompilerParams(
            dimension_semantics=("parallel", "parallel"),
            vmem_limit_bytes=vmem_limit),
        cost_estimate=pl.CostEstimate(
            flops=int(flops), transcendentals=0,
            bytes_accessed=int(bytes_accessed)),
    )(*operands)

    return out_flat.reshape(N, Cout, H, W)


def reference(x, dw_weight, pw_weight, gamma, beta, rmean, rvar, eps=1e-5):
    """Pure-JAX reference mirroring the PyTorch forward (eval-mode BN)."""
    Cin = x.shape[1]
    y = lax.conv_general_dilated(
        x, dw_weight, window_strides=(1, 1), padding=((1, 1), (1, 1)),
        feature_group_count=Cin,
        dimension_numbers=("NCHW", "OIHW", "NCHW"))
    y = lax.conv_general_dilated(
        y, pw_weight, window_strides=(1, 1), padding="VALID",
        dimension_numbers=("NCHW", "OIHW", "NCHW"))
    scale = (gamma / jnp.sqrt(rvar + eps)).reshape(1, -1, 1, 1)
    shift = (beta - rmean * gamma / jnp.sqrt(rvar + eps)).reshape(1, -1, 1, 1)
    return jnp.maximum(y * scale + shift, 0.0)


if __name__ == "__main__":
    key = jax.random.PRNGKey(0)
    kx, kdw, kpw, kg, kb, km, kv = jax.random.split(key, 7)

    N, Cin, Cout, H, W = 2, 4, 8, 16, 16

    x = jax.random.normal(kx, (N, Cin, H, W), jnp.float32)
    dw_w = jax.random.normal(kdw, (Cin, 1, 3, 3), jnp.float32) * 0.3
    pw_w = jax.random.normal(kpw, (Cout, Cin, 1, 1), jnp.float32) * 0.3
    gamma = 1.0 + 0.1 * jax.random.normal(kg, (Cout,), jnp.float32)
    beta = 0.1 * jax.random.normal(kb, (Cout,), jnp.float32)
    running_mean = 0.1 * jax.random.normal(km, (Cout,), jnp.float32)
    running_var = 1.0 + 0.1 * jnp.abs(jax.random.normal(kv, (Cout,), jnp.float32))

    ref = reference(x, dw_w, pw_w, gamma, beta, running_mean, running_var)

    # 1) row_tile=8 -> 2 row tiles per image, exercises the in-kernel halo path
    out_tiled = jax.block_until_ready(
        base_conv_dw(x, dw_w, pw_w, gamma, beta, running_mean, running_var,
                     row_tile=8))
    assert out_tiled.shape == (N, Cout, H, W)
    err = float(jnp.max(jnp.abs(out_tiled - ref)))
    assert jnp.allclose(out_tiled, ref, atol=1e-4, rtol=1e-4), err

    # 2) auto tile -> full image, nt==1 fast path with no halo inputs
    out_auto = jax.block_until_ready(
        base_conv_dw(x, dw_w, pw_w, gamma, beta, running_mean, running_var))
    err = float(jnp.max(jnp.abs(out_auto - ref)))
    assert jnp.allclose(out_auto, ref, atol=1e-4, rtol=1e-4), err

    # 3) bf16 narrow-I/O / bf16-MXU-operand path (f32 accumulation)
    x_bf = x.astype(jnp.bfloat16)
    out_bf = jax.block_until_ready(
        base_conv_dw(x_bf, dw_w, pw_w, gamma, beta, running_mean, running_var))
    assert out_bf.dtype == jnp.bfloat16
    ref_bf = reference(x_bf.astype(jnp.float32), dw_w, pw_w, gamma, beta,
                       running_mean, running_var)
    err = float(jnp.max(jnp.abs(out_bf.astype(jnp.float32) - ref_bf)))
    assert jnp.allclose(out_bf.astype(jnp.float32), ref_bf,
                        atol=8e-2, rtol=8e-2), err

    print("KERNEL_OK")
</pallas_src>

<mosaic_0001>
module attributes {stable_mosaic.version = 11 : i64} {
  func.func @_fused_dw_pw_bn_relu_kernel(%arg0: i32, %arg1: i32, %arg2: memref<1x4x128xf32, #tpu.memory_space<vmem>>, %arg3: memref<1x4x128xf32, #tpu.memory_space<vmem>>, %arg4: memref<1x4x128xf32, #tpu.memory_space<vmem>>, %arg5: memref<8x36xf32, #tpu.memory_space<vmem>>, %arg6: memref<8x1xf32, #tpu.memory_space<vmem>>, %arg7: memref<1x8x128xf32, #tpu.memory_space<vmem>>, %arg8: memref<4x272xf32, #tpu.memory_space<vmem>>) attributes {dimension_semantics = [#tpu.dimension_semantics<parallel>, #tpu.dimension_semantics<parallel>], iteration_bounds = array<i64: 2, 2>, scalar_prefetch = 0 : i64, scratch_operands = 1 : i64, tpu.core_type = #tpu.core_type<tc>, window_params = [{transform_indices = @transform_0, window_bounds = array<i64: 1, 4, 128>}, {transform_indices = @transform_1, window_bounds = array<i64: 1, 4, 128>}, {transform_indices = @transform_2, window_bounds = array<i64: 1, 4, 128>}, {pipeline_mode = #tpu.pipeline_mode<synchronous>, transform_indices = @transform_3, window_bounds = array<i64: 8, 36>}, {pipeline_mode = #tpu.pipeline_mode<synchronous>, transform_indices = @transform_4, window_bounds = array<i64: 8, 1>}, {transform_indices = @transform_5, window_bounds = array<i64: 1, 8, 128>}]} {
    %c0 = arith.constant 0 : index
    %c0_0 = arith.constant 0 : index
    %c0_1 = arith.constant 0 : index
    %0 = vector.load %arg2[%c0, %c0_0, %c0_1] : memref<1x4x128xf32, #tpu.memory_space<vmem>>, vector<1x4x128xf32>
    %1 = vector.shape_cast %0 : vector<1x4x128xf32> to vector<4x128xf32>
    %c0_2 = arith.constant 0 : index
    %c0_3 = arith.constant 0 : index
    %c0_4 = arith.constant 0 : index
    %2 = vector.load %arg3[%c0_2, %c0_3, %c0_4] : memref<1x4x128xf32, #tpu.memory_space<vmem>>, vector<1x4x128xf32>
    %3 = vector.shape_cast %2 : vector<1x4x128xf32> to vector<4x128xf32>
    %4 = vector.extract_strided_slice %3 {offsets = [0, 112], sizes = [4, 16], strides = [1, 1]} : vector<4x128xf32> to vector<4x16xf32>
    %c0_5 = arith.constant 0 : index
    %c0_6 = arith.constant 0 : index
    %c0_7 = arith.constant 0 : index
    %5 = vector.load %arg4[%c0_5, %c0_6, %c0_7] : memref<1x4x128xf32, #tpu.memory_space<vmem>>, vector<1x4x128xf32>
    %6 = vector.shape_cast %5 : vector<1x4x128xf32> to vector<4x128xf32>
    %7 = vector.extract_strided_slice %6 {offsets = [0, 0], sizes = [4, 16], strides = [1, 1]} : vector<4x128xf32> to vector<4x16xf32>
    %c0_i32 = arith.constant 0 : i32
    %8 = arith.cmpi sgt, %arg1, %c0_i32 : i32
    %9 = arith.extui %8 : i1 to i32
    %10 = arith.sitofp %9 : i32 to f32
    %11 = vector.broadcast %10 : f32 to vector<4x16xf32>
    %12 = arith.mulf %4, %11 : vector<4x16xf32>
    %c1_i32 = arith.constant 1 : i32
    %13 = arith.cmpi slt, %arg1, %c1_i32 : i32
    %14 = arith.extui %13 : i1 to i32
    %15 = arith.sitofp %14 : i32 to f32
    %16 = vector.broadcast %15 : f32 to vector<4x16xf32>
    %17 = arith.mulf %7, %16 : vector<4x16xf32>
    %c0_8 = arith.constant 0 : index
    %c112 = arith.constant 112 : index
    %18 = vector.load %arg8[%c0_8, %c112] : memref<4x272xf32, #tpu.memory_space<vmem>>, vector<4x16xf32>
    tpu.vector_store %arg8[%c0_8, %c112], %12 {strides = array<i32>} : memref<4x272xf32, #tpu.memory_space<vmem>>, vector<4x16xf32>,
    %c0_9 = arith.constant 0 : index
    %c256 = arith.constant 256 : index
    %19 = vector.load %arg8[%c0_9, %c256] : memref<4x272xf32, #tpu.memory_space<vmem>>, vector<4x16xf32>
    tpu.vector_store %arg8[%c0_9, %c256], %17 {strides = array<i32>} : memref<4x272xf32, #tpu.memory_space<vmem>>, vector<4x16xf32>,
    %c0_10 = arith.constant 0 : index
    %c128 = arith.constant 128 : index
    %20 = vector.load %arg8[%c0_10, %c128] : memref<4x272xf32, #tpu.memory_space<vmem>>, vector<4x128xf32>
    tpu.vector_store %arg8[%c0_10, %c128], %1 {strides = array<i32>} : memref<4x272xf32, #tpu.memory_space<vmem>>, vector<4x128xf32>,
    %21 = tpu.iota {dimensions = array<i32: 1>} : vector<4x128xi32>
    %c16_i32 = arith.constant 16 : i32
    %c0_i32_11 = arith.constant 0 : i32
    %22 = arith.cmpi eq, %c16_i32, %c0_i32_11 : i32
    %c1_i32_12 = arith.constant 1 : i32
    %23 = arith.select %22, %c1_i32_12, %c16_i32 : i32
    %24 = vector.broadcast %23 : i32 to vector<4x128xi32>
    %25 = arith.remsi %21, %24 : vector<4x128xi32>
    %c0_i32_13 = arith.constant 0 : i32
    %26 = vector.broadcast %c0_i32_13 : i32 to vector<4x128xi32>
    %27 = arith.cmpi ne, %25, %26 : vector<4x128xi32>
    %c0_i32_14 = arith.constant 0 : i32
    %28 = vector.broadcast %c0_i32_14 : i32 to vector<4x128xi32>
    %29 = arith.cmpi slt, %25, %28 : vector<4x128xi32>
    %c0_i32_15 = arith.constant 0 : i32
    %30 = arith.cmpi slt, %23, %c0_i32_15 : i32
    %31 = vector.broadcast %30 : i1 to vector<4x128xi1>
    %32 = vector.broadcast %31 : vector<4x128xi1> to vector<4x128xi1>
    %33 = arith.xori %29, %32 : vector<4x128xi1>
    %34 = arith.andi %33, %27 : vector<4x128xi1>
    %35 = vector.broadcast %23 : i32 to vector<4x128xi32>
    %36 = arith.addi %25, %35 : vector<4x128xi32>
    %37 = arith.select %34, %36, %25 : vector<4x128xi1>, vector<4x128xi32>
    %c1_i32_16 = arith.constant 1 : i32
    %38 = vector.broadcast %c1_i32_16 : i32 to vector<4x128xi32>
    %39 = arith.cmpi sge, %37, %38 : vector<4x128xi32>
    %40 = arith.extui %39 : vector<4x128xi1> to vector<4x128xi32>
    %41 = arith.sitofp %40 : vector<4x128xi32> to vector<4x128xf32>
    %c14_i32 = arith.constant 14 : i32
    %42 = vector.broadcast %c14_i32 : i32 to vector<4x128xi32>
    %43 = arith.cmpi sle, %37, %42 : vector<4x128xi32>
    %44 = arith.extui %43 : vector<4x128xi1> to vector<4x128xi32>
    %45 = arith.sitofp %44 : vector<4x128xi32> to vector<4x128xf32>
    %c0_17 = arith.constant 0 : index
    %c112_18 = arith.constant 112 : index
    %46 = vector.load %arg8[%c0_17, %c112_18] : memref<4x272xf32, #tpu.memory_space<vmem>>, vector<4x128xf32>
    %c1_i32_19 = arith.constant 1 : i32
    %47 = tpu.dynamic_rotate %46 by %c1_i32_19 dim 1 : vector<4x128xf32>, i32 -> vector<4x128xf32>
    %48 = arith.mulf %47, %41 : vector<4x128xf32>
    %c0_20 = arith.constant 0 : index
    %c0_21 = arith.constant 0 : index
    %49 = vector.load %arg5[%c0_20, %c0_21] : memref<8x36xf32, #tpu.memory_space<vmem>>, vector<8x4xf32>
    %cst = arith.constant dense<0.000000e+00> : vector<8x128xf32>
    %50 = tpu.matmul %49, %48, %cst {dimension_numbers = #tpu.dot_dimension_numbers<[1], [0], [0], [1], [0, 0, 1, 1], [], []>} : vector<8x4xf32>, vector<4x128xf32>, vector<8x128xf32> -> vector<8x128xf32>
    %c0_22 = arith.constant 0 : index
    %c4 = arith.constant 4 : index
    %51 = vector.load %arg5[%c0_22, %c4] : memref<8x36xf32, #tpu.memory_space<vmem>>, vector<8x4xf32>
    %cst_23 = arith.constant dense<0.000000e+00> : vector<8x128xf32>
    %52 = tpu.matmul %51, %46, %cst_23 {dimension_numbers = #tpu.dot_dimension_numbers<[1], [0], [0], [1], [0, 0, 1, 1], [], []>} : vector<8x4xf32>, vector<4x128xf32>, vector<8x128xf32> -> vector<8x128xf32>
    %53 = arith.addf %50, %52 : vector<8x128xf32>
    %c127_i32 = arith.constant 127 : i32
    %54 = tpu.dynamic_rotate %46 by %c127_i32 dim 1 : vector<4x128xf32>, i32 -> vector<4x128xf32>
    %55 = arith.mulf %54, %45 : vector<4x128xf32>
    %c0_24 = arith.constant 0 : index
    %c8 = arith.constant 8 : index
    %56 = vector.load %arg5[%c0_24, %c8] : memref<8x36xf32, #tpu.memory_space<vmem>>, vector<8x4xf32>
    %cst_25 = arith.constant dense<0.000000e+00> : vector<8x128xf32>
    %57 = tpu.matmul %56, %55, %cst_25 {dimension_numbers = #tpu.dot_dimension_numbers<[1], [0], [0], [1], [0, 0, 1, 1], [], []>} : vector<8x4xf32>, vector<4x128xf32>, vector<8x128xf32> -> vector<8x128xf32>
    %58 = arith.addf %53, %57 : vector<8x128xf32>
    %c1_i32_26 = arith.constant 1 : i32
    %59 = tpu.dynamic_rotate %1 by %c1_i32_26 dim 1 : vector<4x128xf32>, i32 -> vector<4x128xf32>
    %60 = arith.mulf %59, %41 : vector<4x128xf32>
    %c0_27 = arith.constant 0 : index
    %c12 = arith.constant 12 : index
    %61 = vector.load %arg5[%c0_27, %c12] : memref<8x36xf32, #tpu.memory_space<vmem>>, vector<8x4xf32>
    %cst_28 = arith.constant dense<0.000000e+00> : vector<8x128xf32>
    %62 = tpu.matmul %61, %60, %cst_28 {dimension_numbers = #tpu.dot_dimension_numbers<[1], [0], [0], [1], [0, 0, 1, 1], [], []>} : vector<8x4xf32>, vector<4x128xf32>, vector<8x128xf32> -> vector<8x128xf32>
    %63 = arith.addf %58, %62 : vector<8x128xf32>
    %c0_29 = arith.constant 0 : index
    %c16 = arith.constant 16 : index
    %64 = vector.load %arg5[%c0_29, %c16] : memref<8x36xf32, #tpu.memory_space<vmem>>, vector<8x4xf32>
    %cst_30 = arith.constant dense<0.000000e+00> : vector<8x128xf32>
    %65 = tpu.matmul %64, %1, %cst_30 {dimension_numbers = #tpu.dot_dimension_numbers<[1], [0], [0], [1], [0, 0, 1, 1], [], []>} : vector<8x4xf32>, vector<4x128xf32>, vector<8x128xf32> -> vector<8x128xf32>
    %66 = arith.addf %63, %65 : vector<8x128xf32>
    %c127_i32_31 = arith.constant 127 : i32
    %67 = tpu.dynamic_rotate %1 by %c127_i32_31 dim 1 : vector<4x128xf32>, i32 -> vector<4x128xf32>
    %68 = arith.mulf %67, %45 : vector<4x128xf32>
    %c0_32 = arith.constant 0 : index
    %c20 = arith.constant 20 : index
    %69 = vector.load %arg5[%c0_32, %c20] : memref<8x36xf32, #tpu.memory_space<vmem>>, vector<8x4xf32>
    %cst_33 = arith.constant dense<0.000000e+00> : vector<8x128xf32>
    %70 = tpu.matmul %69, %68, %cst_33 {dimension_numbers = #tpu.dot_dimension_numbers<[1], [0], [0], [1], [0, 0, 1, 1], [], []>} : vector<8x4xf32>, vector<4x128xf32>, vector<8x128xf32> -> vector<8x128xf32>
    %71 = arith.addf %66, %70 : vector<8x128xf32>
    %c0_34 = arith.constant 0 : index
    %c144 = arith.constant 144 : index
    %72 = vector.load %arg8[%c0_34, %c144] : memref<4x272xf32, #tpu.memory_space<vmem>>, vector<4x128xf32>
    %c1_i32_35 = arith.constant 1 : i32
    %73 = tpu.dynamic_rotate %72 by %c1_i32_35 dim 1 : vector<4x128xf32>, i32 -> vector<4x128xf32>
    %74 = arith.mulf %73, %41 : vector<4x128xf32>
    %c0_36 = arith.constant 0 : index
    %c24 = arith.constant 24 : index
    %75 = vector.load %arg5[%c0_36, %c24] : memref<8x36xf32, #tpu.memory_space<vmem>>, vector<8x4xf32>
    %cst_37 = arith.constant dense<0.000000e+00> : vector<8x128xf32>
    %76 = tpu.matmul %75, %74, %cst_37 {dimension_numbers = #tpu.dot_dimension_numbers<[1], [0], [0], [1], [0, 0, 1, 1], [], []>} : vector<8x4xf32>, vector<4x128xf32>, vector<8x128xf32> -> vector<8x128xf32>
    %77 = arith.addf %71, %76 : vector<8x128xf32>
    %c0_38 = arith.constant 0 : index
    %c28 = arith.constant 28 : index
    %78 = vector.load %arg5[%c0_38, %c28] : memref<8x36xf32, #tpu.memory_space<vmem>>, vector<8x4xf32>
    %cst_39 = arith.constant dense<0.000000e+00> : vector<8x128xf32>
    %79 = tpu.matmul %78, %72, %cst_39 {dimension_numbers = #tpu.dot_dimension_numbers<[1], [0], [0], [1], [0, 0, 1, 1], [], []>} : vector<8x4xf32>, vector<4x128xf32>, vector<8x128xf32> -> vector<8x128xf32>
    %80 = arith.addf %77, %79 : vector<8x128xf32>
    %c127_i32_40 = arith.constant 127 : i32
    %81 = tpu.dynamic_rotate %72 by %c127_i32_40 dim 1 : vector<4x128xf32>, i32 -> vector<4x128xf32>
    %82 = arith.mulf %81, %45 : vector<4x128xf32>
    %c0_41 = arith.constant 0 : index
    %c32 = arith.constant 32 : index
    %83 = vector.load %arg5[%c0_41, %c32] : memref<8x36xf32, #tpu.memory_space<vmem>>, vector<8x4xf32>
    %cst_42 = arith.constant dense<0.000000e+00> : vector<8x128xf32>
    %84 = tpu.matmul %83, %82, %cst_42 {dimension_numbers = #tpu.dot_dimension_numbers<[1], [0], [0], [1], [0, 0, 1, 1], [], []>} : vector<8x4xf32>, vector<4x128xf32>, vector<8x128xf32> -> vector<8x128xf32>
    %85 = arith.addf %80, %84 : vector<8x128xf32>
    %c0_43 = arith.constant 0 : index
    %c0_44 = arith.constant 0 : index
    %86 = vector.load %arg6[%c0_43, %c0_44] : memref<8x1xf32, #tpu.memory_space<vmem>>, vector<8x1xf32>
    %87 = vector.broadcast %86 : vector<8x1xf32> to vector<8x128xf32>
    %88 = arith.addf %85, %87 : vector<8x128xf32>
    %cst_45 = arith.constant 0.000000e+00 : f32
    %89 = vector.broadcast %cst_45 : f32 to vector<8x128xf32>
    %90 = arith.maximumf %88, %89 : vector<8x128xf32>
    %c0_46 = arith.constant 0 : index
    %c0_47 = arith.constant 0 : index
    %c0_48 = arith.constant 0 : index
    %91 = vector.load %arg7[%c0_46, %c0_47, %c0_48] : memref<1x8x128xf32, #tpu.memory_space<vmem>>, vector<1x8x128xf32>
    %92 = vector.shape_cast %91 : vector<1x8x128xf32> to vector<8x128xf32>
    %93 = vector.shape_cast %90 : vector<8x128xf32> to vector<1x8x128xf32>
    tpu.vector_store %arg7[%c0_46, %c0_47, %c0_48], %93 {strides = array<i32>} : memref<1x8x128xf32, #tpu.memory_space<vmem>>, vector<1x8x128xf32>,
    return
  }
  func.func @transform_0(%arg0: i32, %arg1: i32) -> (i32, i32, i32) {
    %c0_i32 = arith.constant 0 : i32
    %c0_i32_0 = arith.constant 0 : i32
    return %arg0, %c0_i32, %arg1 : i32, i32, i32
  }
  func.func @transform_1(%arg0: i32, %arg1: i32) -> (i32, i32, i32) {
    %c1_i32 = arith.constant 1 : i32
    %0 = arith.muli %arg1, %c1_i32 : i32
    %c1_i32_0 = arith.constant 1 : i32
    %1 = arith.subi %0, %c1_i32_0 : i32
    %c0_i32 = arith.constant 0 : i32
    %2 = arith.maxsi %1, %c0_i32 : i32
    %c0_i32_1 = arith.constant 0 : i32
    %c0_i32_2 = arith.constant 0 : i32
    return %arg0, %c0_i32_1, %2 : i32, i32, i32
  }
  func.func @transform_2(%arg0: i32, %arg1: i32) -> (i32, i32, i32) {
    %c1_i32 = arith.constant 1 : i32
    %0 = arith.addi %arg1, %c1_i32 : i32
    %c1_i32_0 = arith.constant 1 : i32
    %1 = arith.muli %0, %c1_i32_0 : i32
    %c1_i32_1 = arith.constant 1 : i32
    %2 = arith.minsi %1, %c1_i32_1 : i32
    %c0_i32 = arith.constant 0 : i32
    %c0_i32_2 = arith.constant 0 : i32
    return %arg0, %c0_i32, %2 : i32, i32, i32
  }
  func.func @transform_3(%arg0: i32, %arg1: i32) -> (i32, i32) {
    %c0_i32 = arith.constant 0 : i32
    %c0_i32_0 = arith.constant 0 : i32
    %c0_i32_1 = arith.constant 0 : i32
    return %c0_i32, %c0_i32_0 : i32, i32
  }
  func.func @transform_4(%arg0: i32, %arg1: i32) -> (i32, i32) {
    %c0_i32 = arith.constant 0 : i32
    %c0_i32_0 = arith.constant 0 : i32
    %c0_i32_1 = arith.constant 0 : i32
    return %c0_i32, %c0_i32_0 : i32, i32
  }
  func.func @transform_5(%arg0: i32, %arg1: i32) -> (i32, i32, i32) {
    %c0_i32 = arith.constant 0 : i32
    %c0_i32_0 = arith.constant 0 : i32
    return %arg0, %c0_i32, %arg1 : i32, i32, i32
  }
}

</mosaic_0001>

<llo_original>
// kernel: tpu_custom_call.1
$region0: #{tpu_custom_call.1}
  #allocation0 [shape = 'u32[]', space=smem, size = 0x4, offset = 0x4, fixed_abs, tag = 'smem constant byte address 0x4 - core index']
  #allocation1 [shape = 'u32[144,128]{1,0:T(1,128)}', space=vmem, size = 0x12000, scoped, tag = 'internal scratch']
  #allocation2 [shape = 'f32[4,272]{1,0:T(4,128)}', space=vmem, size = 0x1800, scoped, tag = 'scratch operand']
  %s0 = inlined_call_operand.hbm [shape: f32[2,4,256], index: 0, kind: input, shape index: {}]
  %s1 = inlined_call_operand.hbm [shape: f32[2,4,256], index: 1, kind: input, shape index: {}]
  %s2 = inlined_call_operand.vmem [shape: f32[2,4,256], index: 2, kind: input, shape index: {}]
  %s3 = inlined_call_operand.hbm [shape: f32[8,36], index: 3, kind: input, shape index: {}]
  %s4 = inlined_call_operand.vmem [shape: f32[8,1], index: 4, kind: input, shape index: {}]
  %s5 = inlined_call_operand.hbm [shape: f32[2,8,256], index: 5, kind: output, shape index: {}]
  %s6 = sld [smem:[#allocation0]]
  $region65: #{tpu_custom_call.1} parent=0
    _
  %s8 = ssub.s32 1, %s6
  %s9 = scalar_select 0, %s8, %s6
  $region1: #{tpu_custom_call.1} parent=0
    #allocation3 [shape = 'u8[4096]{0}', space=vmem, size = 0x1000, scoped, tag = 'input window, operand 0']
    #allocation4 [shape = 's32[2]{0}', space=sflag, size = 0x8, scoped, tag = 'scoped memory for tpu_custom_call.1']
    #allocation5 [shape = 's32[2]{0}', space=sflag, size = 0x8, scoped, tag = 'scoped memory for tpu_custom_call.1']
    #allocation6 [shape = 'u8[4096]{0}', space=vmem, size = 0x1000, scoped, tag = 'input window, operand 1']
    #allocation7 [shape = 's32[2]{0}', space=sflag, size = 0x8, scoped, tag = 'scoped memory for tpu_custom_call.1']
    #allocation8 [shape = 'u8[4096]{0}', space=vmem, size = 0x1000, scoped, tag = 'input window, operand 3, single buffered']
    #allocation9 [shape = 'u8[8192]{0}', space=vmem, size = 0x2000, scoped, tag = 'output window, operand 0']
    %10 = vsyncpa [#allocation4], 0
    %s11 = scalar_lea.sflag [#allocation4], 1
    %12 = vsyncpa %s11, 0
    %13 = vsyncpa [#allocation7], 0
    %s14 = scalar_lea.sflag [#allocation7], 1
    %15 = vsyncpa %s14, 0
    %16 = vsyncpa [#allocation5], 0
    %s17 = scalar_lea.sflag [#allocation5], 1
    %18 = vsyncpa %s17, 0
    loop: start=0, step=1, limit=6
    $region2: #{tpu_custom_call.1} parent=1 // loop_pre_header
      _
    $region3: #{tpu_custom_call.1} parent=1 // loop_header
      %s20 = sphi 0, %s24
      %p21 = scmp.ge.s32.totalorder %s20, 6
      %s27 = sphi 0, %s39
      %s28 = sphi 0, %s35
      %s29 = sphi 0, %s27
      %s30 = sphi 0, %s28
      %s31 = sphi 0, %s29
      %s32 = sphi 0, %s30
      %s44 = sphi 0, %s46
      %s47 = sphi 0, %s44
      %s48 = sphi 0, %s47
      %s64 = sphi 0, %s48
      %s78 = sphi 0, %s80
      %s81 = sphi 0, %s78
      %s82 = sphi 0, %s81
      %s98 = sphi 0, %s82
      %s112 = sphi 0, %s114
      %s115 = sphi 0, %s112
      %s116 = sphi 0, %s115
      %s132 = sphi 0, %s116
      %s136 = sphi 0, %s136
      %s138 = sphi 0, %s136
      %s139 = sphi 0, %s138
      %s153 = sphi 0, %s139
      %s157 = sphi 0, %s157
      %s159 = sphi 0, %s157
      %s160 = sphi 0, %s159
      %s174 = sphi 0, %s160
      %s182 = sphi 0, %s184
      %s185 = sphi 0, %s182
      %s186 = sphi 0, %s185
      %s202 = sphi 0, %s186
    $region4: #{tpu_custom_call.1} parent=1 // loop_header_branch
      %23 = sbr.rel (%p21) target = $region8
    $region5: #{tpu_custom_call.1} parent=1 // loop_body
      %s25 = ssub.s32 %s20, 1
      %s26 = ssub.s32 %s20, 2
      %s33 = sadd.s32 1, %s28
      %p34 = scmp.ge.s32.totalorder %s33, 2
      %s35 = scalar_select %p34, 0, %s33
      %s36 = sadd.s32 1, %s27
      %s37 = scalar_select %p34, %s36, %s27
      %p38 = scmp.ge.s32.totalorder %s37, 2
      %s39 = scalar_select %p38, 0, %s37
      %s40 = ssub.s32 %s27, %s39
      %s41 = ssub.s32 %s28, %s35
      %s42 = sor.u32 %s40, %s41
      %p43 = scmp.eq.s32.totalorder %s42, 0
      %s45 = sadd.s32 %s44, 1
      %s46 = scalar_select %p43, %s44, %s45
      %p49 = pneg %p43
      %p50 = scmp.eq.s32.totalorder %s20, 3
      %p51 = por %p49, %p50
      %p52 = scmp.ne.s32.totalorder %s44, %s47
      %p53 = scmp.eq.s32.totalorder %s20, 0
      %p54 = por %p52, %p53
      %p55 = scmp.ne.s32.totalorder %s44, %s47
      %p56 = scmp.eq.s32.totalorder %s25, 3
      %p57 = por %p55, %p56
      %p58 = scmp.ne.s32.totalorder %s47, %s48
      %p59 = scmp.eq.s32.totalorder %s25, 0
      %p60 = por %p58, %p59
      %p61 = scmp.ne.s32.totalorder %s47, %s48
      %p62 = scmp.eq.s32.totalorder %s26, 3
      %p63 = por %p61, %p62
      %p65 = scmp.ne.s32.totalorder %s48, %s64
      %p66 = scmp.eq.s32.totalorder %s26, 0
      %p67 = por %p65, %p66
      %s68 = ssub.s32 %s28, 1
      %p69 = scmp.gt.s32.totalorder %s68, 0
      %s70 = scalar_select %p69, %s68, 0
      %s71 = ssub.s32 %s35, 1
      %p72 = scmp.gt.s32.totalorder %s71, 0
      %s73 = scalar_select %p72, %s71, 0
      %s74 = ssub.s32 %s27, %s39
      %s75 = ssub.s32 %s70, %s73
      %s76 = sor.u32 %s74, %s75
      %p77 = scmp.eq.s32.totalorder %s76, 0
      %s79 = sadd.s32 %s78, 1
      %s80 = scalar_select %p77, %s78, %s79
      %p83 = pneg %p77
      %p84 = scmp.eq.s32.totalorder %s20, 3
      %p85 = por %p83, %p84
      %p86 = scmp.ne.s32.totalorder %s78, %s81
      %p87 = scmp.eq.s32.totalorder %s20, 0
      %p88 = por %p86, %p87
      %p89 = scmp.ne.s32.totalorder %s78, %s81
      %p90 = scmp.eq.s32.totalorder %s25, 3
      %p91 = por %p89, %p90
      %p92 = scmp.ne.s32.totalorder %s81, %s82
      %p93 = scmp.eq.s32.totalorder %s25, 0
      %p94 = por %p92, %p93
      %p95 = scmp.ne.s32.totalorder %s81, %s82
      %p96 = scmp.eq.s32.totalorder %s26, 3
      %p97 = por %p95, %p96
      %p99 = scmp.ne.s32.totalorder %s82, %s98
      %p100 = scmp.eq.s32.totalorder %s26, 0
      %p101 = por %p99, %p100
      %s102 = sadd.s32 %s28, 1
      %p103 = scmp.lt.s32.totalorder %s102, 1
      %s104 = scalar_select %p103, %s102, 1
      %s105 = sadd.s32 %s35, 1
      %p106 = scmp.lt.s32.totalorder %s105, 1
      %s107 = scalar_select %p106, %s105, 1
      %s108 = ssub.s32 %s27, %s39
      %s109 = ssub.s32 %s104, %s107
      %s110 = sor.u32 %s108, %s109
      %p111 = scmp.eq.s32.totalorder %s110, 0
      %s113 = sadd.s32 %s112, 1
      %s114 = scalar_select %p111, %s112, %s113
      %p117 = pneg %p111
      %p118 = scmp.eq.s32.totalorder %s20, 3
      %p119 = por %p117, %p118
      %p120 = scmp.ne.s32.totalorder %s112, %s115
      %p121 = scmp.eq.s32.totalorder %s20, 0
      %p122 = por %p120, %p121
      %p123 = scmp.ne.s32.totalorder %s112, %s115
      %p124 = scmp.eq.s32.totalorder %s25, 3
      %p125 = por %p123, %p124
      %p126 = scmp.ne.s32.totalorder %s115, %s116
      %p127 = scmp.eq.s32.totalorder %s25, 0
      %p128 = por %p126, %p127
      %p129 = scmp.ne.s32.totalorder %s115, %s116
      %p130 = scmp.eq.s32.totalorder %s26, 3
      %p131 = por %p129, %p130
      %p133 = scmp.ne.s32.totalorder %s116, %s132
      %p134 = scmp.eq.s32.totalorder %s26, 0
      %p135 = por %p133, %p134
      %s137 = sadd.s32 %s136, 1
      %p140 = scmp.eq.s32.totalorder %s20, 3
      %p141 = scmp.ne.s32.totalorder %s136, %s138
      %p142 = scmp.eq.s32.totalorder %s20, 0
      %p143 = por %p141, %p142
      %p144 = scmp.ne.s32.totalorder %s136, %s138
      %p145 = scmp.eq.s32.totalorder %s25, 3
      %p146 = por %p144, %p145
      %p147 = scmp.ne.s32.totalorder %s138, %s139
      %p148 = scmp.eq.s32.totalorder %s25, 0
      %p149 = por %p147, %p148
      %p150 = scmp.ne.s32.totalorder %s138, %s139
      %p151 = scmp.eq.s32.totalorder %s26, 3
      %p152 = por %p150, %p151
      %p154 = scmp.ne.s32.totalorder %s139, %s153
      %p155 = scmp.eq.s32.totalorder %s26, 0
      %p156 = por %p154, %p155
      %s158 = sadd.s32 %s157, 1
      %p161 = scmp.eq.s32.totalorder %s20, 3
      %p162 = scmp.ne.s32.totalorder %s157, %s159
      %p163 = scmp.eq.s32.totalorder %s20, 0
      %p164 = por %p162, %p163
      %p165 = scmp.ne.s32.totalorder %s157, %s159
      %p166 = scmp.eq.s32.totalorder %s25, 3
      %p167 = por %p165, %p166
      %p168 = scmp.ne.s32.totalorder %s159, %s160
      %p169 = scmp.eq.s32.totalorder %s25, 0
      %p170 = por %p168, %p169
      %p171 = scmp.ne.s32.totalorder %s159, %s160
      %p172 = scmp.eq.s32.totalorder %s26, 3
      %p173 = por %p171, %p172
      %p175 = scmp.ne.s32.totalorder %s160, %s174
      %p176 = scmp.eq.s32.totalorder %s26, 0
      %p177 = por %p175, %p176
      %s178 = ssub.s32 %s27, %s39
      %s179 = ssub.s32 %s28, %s35
      %s180 = sor.u32 %s178, %s179
      %p181 = scmp.eq.s32.totalorder %s180, 0
      %s183 = sadd.s32 %s182, 1
      %s184 = scalar_select %p181, %s182, %s183
      %p187 = pneg %p181
      %p188 = scmp.eq.s32.totalorder %s20, 3
      %p189 = por %p187, %p188
      %p190 = scmp.ne.s32.totalorder %s182, %s185
      %p191 = scmp.eq.s32.totalorder %s20, 0
      %p192 = por %p190, %p191
      %p193 = scmp.ne.s32.totalorder %s182, %s185
      %p194 = scmp.eq.s32.totalorder %s25, 3
      %p195 = por %p193, %p194
      %p196 = scmp.ne.s32.totalorder %s185, %s186
      %p197 = scmp.eq.s32.totalorder %s25, 0
      %p198 = por %p196, %p197
      %p199 = scmp.ne.s32.totalorder %s185, %s186
      %p200 = scmp.eq.s32.totalorder %s26, 3
      %p201 = por %p199, %p200
      %p203 = scmp.ne.s32.totalorder %s186, %s202
      %p204 = scmp.eq.s32.totalorder %s26, 0
      %p205 = por %p203, %p204
      %p206 = scmp.le.s32.totalorder 1, %s20
      %p207 = scmp.lt.s32.totalorder %s20, 5
      %p208 = pnand %p206, %p207
      %p209 = pneg %p208
      // Predicated region
      $region9: #{tpu_custom_call.1} parent=5 // pred_check
        _
      $region10: #{tpu_custom_call.1} parent=5 // pred_check_branch
        %211 = sbr.rel (%p208) target = $region12
      $region11: #{tpu_custom_call.1} parent=5 // pred_region
        %s212 = ssub.s32 %s20, 1
        // Predicated region
        $region13: #{tpu_custom_call.1} parent=11 // pred_check
          %p213 = pneg %p149
        $region14: #{tpu_custom_call.1} parent=11 // pred_check_branch
          %215 = sbr.rel (%p213) target = $region16
        $region15: #{tpu_custom_call.1} parent=11 // pred_region
          %s217 = ssub.s32 128, 128
          %218 = vsyncadd [#allocation7], %s217
          %s220 = sshll.u32 [#allocation8], 4
          %s221 = int_to_ptr.vmem [resolvable:$true] %s220
          %223 = dma.hbm_to_vmem [thread:$0]  %s3, 128, %s221, [#allocation7]
        $region16: #{tpu_custom_call.1} parent=11 // pred_fallthru
          _
        // Predicated region
        $region17: #{tpu_custom_call.1} parent=11 // pred_check
          %p224 = pneg %p170
        $region18: #{tpu_custom_call.1} parent=11 // pred_check_branch
          %226 = sbr.rel (%p224) target = $region20
        $region19: #{tpu_custom_call.1} parent=11 // pred_region
          _
        $region20: #{tpu_custom_call.1} parent=11 // pred_fallthru
          _
      $region12: #{tpu_custom_call.1} parent=5 // pred_fallthru
        _
      %p227 = scmp.lt.s32.totalorder %s20, 4
      // Predicated region
      $region21: #{tpu_custom_call.1} parent=5 // pred_check
        %p228 = pneg %p227
      $region22: #{tpu_custom_call.1} parent=5 // pred_check_branch
        %230 = sbr.rel (%p228) target = $region24
      $region23: #{tpu_custom_call.1} parent=5 // pred_region
        // Predicated region
        $region25: #{tpu_custom_call.1} parent=23 // pred_check
          %p231 = pneg %p54
        $region26: #{tpu_custom_call.1} parent=23 // pred_check_branch
          %233 = sbr.rel (%p231) target = $region28
        $region27: #{tpu_custom_call.1} parent=23 // pred_region
          %s234 = sand.u32 %s44, 1
          %s235 = scalar_lea.sflag [#allocation4], %s234
          %s236 = sand.u32 %s44, 1
          %s237 = smul.addr %s236, 4
          %s238 = scalar_lea.vmem [#allocation3], %s237
          %s240 = ssub.s32 64, 64
          %241 = vsyncadd %s235, %s240
          %s242 = smul.addr %s27, 2
          %s243 = sadd.s32 %s28, %s242
          %s244 = smul.addr %s243, 64
          %s245 = scalar_lea.hbm %s0, %s244
          %s247 = sshll.u32 %s238, 4
          %s248 = int_to_ptr.vmem [resolvable:$true] %s247
          %250 = dma.hbm_to_vmem [thread:$0]  %s245, 64, %s248, %s235
        $region28: #{tpu_custom_call.1} parent=23 // pred_fallthru
          _
        // Predicated region
        $region29: #{tpu_custom_call.1} parent=23 // pred_check
          %p251 = pneg %p88
        $region30: #{tpu_custom_call.1} parent=23 // pred_check_branch
          %253 = sbr.rel (%p251) target = $region32
        $region31: #{tpu_custom_call.1} parent=23 // pred_region
          %s254 = sand.u32 %s20, 1
          %s255 = scalar_lea.sflag [#allocation7], %s254
          %s256 = sand.u32 %s78, 1
          %s257 = smul.addr %s256, 4
          %s258 = scalar_lea.vmem [#allocation6], %s257
          %s259 = ssub.s32 %s28, 1
          %p260 = scmp.gt.s32.totalorder %s259, 0
          %s261 = scalar_select %p260, %s259, 0
          %s263 = ssub.s32 64, 64
          %264 = vsyncadd %s255, %s263
          %s265 = smul.addr %s27, 2
          %s266 = sadd.s32 %s261, %s265
          %s267 = smul.addr %s266, 64
          %s268 = scalar_lea.hbm %s1, %s267
          %s270 = sshll.u32 %s258, 4
          %s271 = int_to_ptr.vmem [resolvable:$true] %s270
          %273 = dma.hbm_to_vmem [thread:$0]  %s268, 64, %s271, %s255
        $region32: #{tpu_custom_call.1} parent=23 // pred_fallthru
          _
        // Predicated region
        $region33: #{tpu_custom_call.1} parent=23 // pred_check
          %p274 = pneg %p122
        $region34: #{tpu_custom_call.1} parent=23 // pred_check_branch
          %276 = sbr.rel (%p274) target = $region36
        $region35: #{tpu_custom_call.1} parent=23 // pred_region
          %s277 = sadd.s32 %s28, 1
          %p278 = scmp.lt.s32.totalorder %s277, 1
          %s279 = scalar_select %p278, %s277, 1
          %p280 = scmp.lt.s32.totalorder %s27, 1
          %s281 = scalar_select %p280, %s27, 1
          %p282 = scmp.lt.s32.totalorder %s279, 1
          %s283 = scalar_select %p282, %s279, 1
          %s284 = smul.addr %s281, 2
          %s285 = sadd.s32 %s283, %s284
          %s286 = smul.addr %s285, 4
          %s287 = scalar_lea.vmem %s2, %s286
          %s288 = sadd.s32 %s28, 1
          %p289 = scmp.lt.s32.totalorder %s288, 1
          %s290 = scalar_select %p289, %s288, 1
        $region36: #{tpu_custom_call.1} parent=23 // pred_fallthru
          _
      $region24: #{tpu_custom_call.1} parent=5 // pred_fallthru
        _
      %p291 = scmp.le.s32.totalorder 1, %s20
      %p292 = scmp.lt.s32.totalorder %s20, 5
      %p293 = pnand %p291, %p292
      %p294 = pneg %p293
      // Predicated region
      $region37: #{tpu_custom_call.1} parent=5 // pred_check
        _
      $region38: #{tpu_custom_call.1} parent=5 // pred_check_branch
        %296 = sbr.rel (%p293) target = $region40
      $region39: #{tpu_custom_call.1} parent=5 // pred_region
        %s297 = ssub.s32 %s20, 1
        %s298 = sand.u32 %s47, 1
        %s299 = scalar_lea.sflag [#allocation4], %s298
        %s300 = sand.u32 %s47, 1
        %s301 = smul.addr %s300, 4
        %s302 = scalar_lea.vmem [#allocation3], %s301
        // Predicated region
        $region41: #{tpu_custom_call.1} parent=39 // pred_check
          %p303 = pneg %p60
        $region42: #{tpu_custom_call.1} parent=39 // pred_check_branch
          %305 = sbr.rel (%p303) target = $region44
        $region43: #{tpu_custom_call.1} parent=39 // pred_region
          %306 = dma.done %s299, 64
        $region44: #{tpu_custom_call.1} parent=39 // pred_fallthru
          _
        %s307 = sand.u32 %s25, 1
        %s308 = scalar_lea.sflag [#allocation7], %s307
        %s309 = sand.u32 %s81, 1
        %s310 = smul.addr %s309, 4
        %s311 = scalar_lea.vmem [#allocation6], %s310
        // Predicated region
        $region45: #{tpu_custom_call.1} parent=39 // pred_check
          %p312 = pneg %p94
        $region46: #{tpu_custom_call.1} parent=39 // pred_check_branch
          %314 = sbr.rel (%p312) target = $region48
        $region47: #{tpu_custom_call.1} parent=39 // pred_region
          %315 = dma.done %s308, 64
        $region48: #{tpu_custom_call.1} parent=39 // pred_fallthru
          _
        // Predicated region
        $region49: #{tpu_custom_call.1} parent=39 // pred_check
          %p316 = pneg %p149
        $region50: #{tpu_custom_call.1} parent=39 // pred_check_branch
          %318 = sbr.rel (%p316) target = $region52
        $region51: #{tpu_custom_call.1} parent=39 // pred_region
          %319 = dma.done [#allocation7], 128
        $region52: #{tpu_custom_call.1} parent=39 // pred_fallthru
          _
        %s320 = sand.u32 %s47, 1
        %s321 = scalar_lea.sflag [#allocation4], %s320
        %s322 = sand.u32 %s47, 1
        %s323 = smul.addr %s322, 4
        %s324 = scalar_lea.vmem [#allocation3], %s323
        %p325 = pneg %p60
        %p326 = pneg %p57
        %s327 = sand.u32 %s25, 1
        %s328 = scalar_lea.sflag [#allocation7], %s327
        %s329 = sand.u32 %s81, 1
        %s330 = smul.addr %s329, 4
        %s331 = scalar_lea.vmem [#allocation6], %s330
        %p332 = pneg %p94
        %p333 = pneg %p91
        %s334 = sadd.s32 %s30, 1
        %p335 = scmp.lt.s32.totalorder %s334, 1
        %s336 = scalar_select %p335, %s334, 1
        %p337 = scmp.lt.s32.totalorder %s29, 1
        %s338 = scalar_select %p337, %s29, 1
        %p339 = scmp.lt.s32.totalorder %s336, 1
        %s340 = scalar_select %p339, %s336, 1
        %s341 = smul.addr %s338, 2
        %s342 = sadd.s32 %s340, %s341
        %s343 = smul.addr %s342, 4
        %s344 = scalar_lea.vmem %s2, %s343
        %p345 = pneg %p128
        %p346 = pneg %p125
        %p347 = pneg %p149
        %p348 = pneg %p146
        %p349 = pneg %p170
        %p350 = pneg %p167
        %p351 = pneg %p198
        %p352 = pneg %p195
        %s353 = sand.u32 %s185, 1
        %s354 = scalar_lea.sflag [#allocation5], %s353
        %s355 = sand.u32 %s185, 1
        %s356 = smul.addr %s355, 8
        %s357 = scalar_lea.vmem [#allocation9], %s356
        %s358 = ssub.s32 %s30, 1
        %p359 = scmp.gt.s32.totalorder %s358, 0
        %s360 = scalar_select %p359, %s358, 0
        %s361 = sadd.s32 %s30, 1
        %p362 = scmp.lt.s32.totalorder %s361, 1
        %s363 = scalar_select %p362, %s361, 1
        %p364 = scmp.lt.s32.totalorder %s29, 1
        %s365 = scalar_select %p364, %s29, 1
        %p366 = scmp.lt.s32.totalorder %s363, 1
        %s367 = scalar_select %p366, %s363, 1
        %s368 = smul.addr %s365, 2
        %s369 = sadd.s32 %s367, %s368
        %s370 = smul.addr %s369, 4
        %s371 = scalar_lea.vmem %s2, %s370
        %s372 = sadd.s32 %s30, 1
        %p373 = scmp.lt.s32.totalorder %s372, 1
        %s374 = scalar_select %p373, %s372, 1
        %v375 = vld [vmem:[%s302] sm:$0xf]
        %v376 = vld [vmem:[%s311] sm:$0xf]
        %v377 = vld [vmem:[%s371] sm:$0xf]
        %p378 = scmp.gt.s32.totalorder %s30, 0
        %s379 = scalar_select %p378, 1, 0
        %s380 = scvt.s32.f32 %s379
        %v381 = vstv %s380
        %v382 = vmul.f32 %v376, %v381
        %p383 = scmp.lt.s32.totalorder %s30, 1
        %s384 = scalar_select %p383, 1, 0
        %s385 = scvt.s32.f32 %s384
        %v386 = vstv %s385
        %v387 = vmul.f32 %v377, %v386
        %vm388 = vcmask 1044352
        %389 = vst.msk [vmem:[#allocation2] sm:$0xf] %vm388, %v382
        %vm390 = vcmask 125952
        %391 = vst.msk [vmem:[#allocation2 + $0x8] sm:$0xf] %vm390, %v387
        %392 = vst [vmem:[#allocation2 + $0x4] sm:$0xf] %v375
        %v393 = vlaneseq
        %v394 = vand.u32 %v393, 127
        %vm395 = vcmp.lt.s32.totalorder %v394, 0
        %v396 = vsub.s32 0, %v394
        %v397 = vsel %vm395, %v396, %v394
        %v398 = vshrl.u32 %v397, 4
        %v399 = vand.u32 %v397, 15
        %v400 = vsub.s32 0, %v399
        %v401 = vsel %vm395, %v400, %v399
        %vm402 = vcmp.ne.s32.totalorder %v401, 0
        %vm403 = vcmp.lt.s32.totalorder %v401, 0
        %vm404 = vmand %vm403, %vm402
        %v405 = vadd.s32 %v401, 16
        %v406 = vsel %vm404, %v405, %v401
        %vm407 = vcmp.ge.s32.totalorder %v406, 1
        %v408 = vsel %vm407, 1, 0
        %v409 = vcvt.s32.f32 %v408
        %vm410 = vcmp.le.s32.totalorder %v406, 14
        %v411 = vsel %vm410, 1, 0
        %v412 = vcvt.s32.f32 %v411
        %v413 = vld [vmem:[#allocation2] sm:$0xff]
        %v415 = vcombine.high %v413, %v413
        %416 = vrot.lane.b32.xlu0 %v413, 16
        %v417 = vpop.permute.xlu0 %416
        %418 = vrot.lane.b32.xlu0 %v415, 16
        %v419 = vpop.permute.xlu0 %418
        %vm420 = vcmask 130048
        %v421 = vsel %vm420, %v417, %v419
        %423 = vrot.lane.b32.xlu0 %v421, 1
        %v424 = vpop.permute.xlu0 %423
        %v425 = vmul.f32 %v424, %v409
        %v426 = vld [vmem:[#allocation8] sm:$0xff]
        %428 = vrot.lane.b32.xlu0 %v426, 124
        %v429 = vpop.permute.xlu0 %428
        %vm430 = vcmask 31744
        %v431 = vsel %vm430, %v429, 0
        %vm433 = vcmask 1043456
        %v434 = vsel %vm433, %v421, 0
        %436 = vmatprep.subr.mxu0 0.0
        %437 = vmatpush1.msra.mxu0 %v434
        %438 = vmatprep.subr.mxu0 0.0
        %439 = vmatpush1.msra.mxu0 0.0
        %440 = vmatprep.subr.mxu0 0.0
        %441 = vmatpush1.msra.mxu0 0.0
        %442 = vmatprep.subr.mxu0 0.0
        %443 = vmatpush1.msra.mxu0 0.0
        %444 = vmatprep.subr.mxu0 0.0
        %445 = vmatpush1.msra.mxu0 0.0
        %446 = vmatprep.subr.mxu0 0.0
        %447 = vmatpush1.msra.mxu0 0.0
        %448 = vmatprep.subr.mxu0 0.0
        %449 = vmatpush1.msra.mxu0 0.0
        %450 = vmatprep.subr.mxu0 0.0
        %451 = vmatpush1.msra.mxu0 0.0
        %452 = vmatprep.subr.mxu0 0.0
        %453 = vmatpush1.msra.mxu0 0.0
        %454 = vmatprep.subr.mxu0 0.0
        %455 = vmatpush1.msra.mxu0 0.0
        %456 = vmatprep.subr.mxu0 0.0
        %457 = vmatpush1.msra.mxu0 0.0
        %458 = vmatprep.subr.mxu0 0.0
        %459 = vmatpush1.msra.mxu0 0.0
        %460 = vmatprep.subr.mxu0 0.0
        %461 = vmatpush1.msra.mxu0 0.0
        %462 = vmatprep.subr.mxu0 0.0
        %463 = vmatpush1.msra.mxu0 0.0
        %464 = vmatprep.subr.mxu0 0.0
        %465 = vmatpush1.msra.mxu0 0.0
        %466 = vmatprep.subr.mxu0 0.0
        %467 = vmatpush1.msra.mxu0 0.0
        %468 = vmatprep.subr.mxu0 0.0
        %469 = vmatpush1.msra.mxu0 0.0
        %470 = vmatprep.subr.mxu0 0.0
        %471 = vmatpush1.msra.mxu0 0.0
        %472 = vmatprep.subr.mxu0 0.0
        %473 = vmatpush1.msra.mxu0 0.0
        %474 = vmatprep.subr.mxu0 0.0
        %475 = vmatpush1.msra.mxu0 0.0
        %476 = vmatprep.subr.mxu0 0.0
        %477 = vmatpush1.msra.mxu0 0.0
        %478 = vmatprep.subr.mxu0 0.0
        %479 = vmatpush1.msra.mxu0 0.0
        %480 = vmatprep.subr.mxu0 0.0
        %481 = vmatpush1.msra.mxu0 0.0
        %482 = vmatprep.subr.mxu0 0.0
        %483 = vmatpush1.msra.mxu0 0.0
        %484 = vmatprep.subr.mxu0 0.0
        %485 = vmatpush1.msra.mxu0 0.0
        %486 = vmatprep.subr.mxu0 0.0
        %487 = vmatpush1.msra.mxu0 0.0
        %488 = vmatprep.subr.mxu0 0.0
        %489 = vmatpush1.msra.mxu0 0.0
        %490 = vmatprep.subr.mxu0 0.0
        %491 = vmatpush1.msra.mxu0 0.0
        %492 = vmatprep.subr.mxu0 0.0
        %493 = vmatpush1.msra.mxu0 0.0
        %494 = vmatprep.subr.mxu0 0.0
        %495 = vmatpush1.msra.mxu0 0.0
        %496 = vmatprep.subr.mxu0 0.0
        %497 = vmatpush1.msra.mxu0 0.0
        %498 = vmatprep.subr.mxu0 0.0
        %499 = vmatpush1.msra.mxu0 0.0
        %500 = vmatprep.mubr.f32.mxu0 0.0
        %501 = vmatmul.mubr.f32.gmra.mrb[0].mxu0 %v431
        %v502 = vpop.f32.mrb[0].mxu0
        %v503 = vadd.f32 0.0, %v502
        %v504 = vpop.f32.mrb[0].mxu0
        %505 = vdwg.mxu0
        %v506 = vsel %vm430, %v426, 0
        %v509 = vsel %vm433, %v425, 0
        %511 = vmatprep.subr.mxu0 0.0
        %512 = vmatpush1.msra.mxu0 %v509
        %513 = vmatprep.subr.mxu0 0.0
        %514 = vmatpush1.msra.mxu0 0.0
        %515 = vmatprep.subr.mxu0 0.0
        %516 = vmatpush1.msra.mxu0 0.0
        %517 = vmatprep.subr.mxu0 0.0
        %518 = vmatpush1.msra.mxu0 0.0
        %519 = vmatprep.subr.mxu0 0.0
        %520 = vmatpush1.msra.mxu0 0.0
        %521 = vmatprep.subr.mxu0 0.0
        %522 = vmatpush1.msra.mxu0 0.0
        %523 = vmatprep.subr.mxu0 0.0
        %524 = vmatpush1.msra.mxu0 0.0
        %525 = vmatprep.subr.mxu0 0.0
        %526 = vmatpush1.msra.mxu0 0.0
        %527 = vmatprep.subr.mxu0 0.0
        %528 = vmatpush1.msra.mxu0 0.0
        %529 = vmatprep.subr.mxu0 0.0
        %530 = vmatpush1.msra.mxu0 0.0
        %531 = vmatprep.subr.mxu0 0.0
        %532 = vmatpush1.msra.mxu0 0.0
        %533 = vmatprep.subr.mxu0 0.0
        %534 = vmatpush1.msra.mxu0 0.0
        %535 = vmatprep.subr.mxu0 0.0
        %536 = vmatpush1.msra.mxu0 0.0
        %537 = vmatprep.subr.mxu0 0.0
        %538 = vmatpush1.msra.mxu0 0.0
        %539 = vmatprep.subr.mxu0 0.0
        %540 = vmatpush1.msra.mxu0 0.0
        %541 = vmatprep.subr.mxu0 0.0
        %542 = vmatpush1.msra.mxu0 0.0
        %543 = vmatprep.subr.mxu0 0.0
        %544 = vmatpush1.msra.mxu0 0.0
        %545 = vmatprep.subr.mxu0 0.0
        %546 = vmatpush1.msra.mxu0 0.0
        %547 = vmatprep.subr.mxu0 0.0
        %548 = vmatpush1.msra.mxu0 0.0
        %549 = vmatprep.subr.mxu0 0.0
        %550 = vmatpush1.msra.mxu0 0.0
        %551 = vmatprep.subr.mxu0 0.0
        %552 = vmatpush1.msra.mxu0 0.0
        %553 = vmatprep.subr.mxu0 0.0
        %554 = vmatpush1.msra.mxu0 0.0
        %555 = vmatprep.subr.mxu0 0.0
        %556 = vmatpush1.msra.mxu0 0.0
        %557 = vmatprep.subr.mxu0 0.0
        %558 = vmatpush1.msra.mxu0 0.0
        %559 = vmatprep.subr.mxu0 0.0
        %560 = vmatpush1.msra.mxu0 0.0
        %561 = vmatprep.subr.mxu0 0.0
        %562 = vmatpush1.msra.mxu0 0.0
        %563 = vmatprep.subr.mxu0 0.0
        %564 = vmatpush1.msra.mxu0 0.0
        %565 = vmatprep.subr.mxu0 0.0
        %566 = vmatpush1.msra.mxu0 0.0
        %567 = vmatprep.subr.mxu0 0.0
        %568 = vmatpush1.msra.mxu0 0.0
        %569 = vmatprep.subr.mxu0 0.0
        %570 = vmatpush1.msra.mxu0 0.0
        %571 = vmatprep.subr.mxu0 0.0
        %572 = vmatpush1.msra.mxu0 0.0
        %573 = vmatprep.subr.mxu0 0.0
        %574 = vmatpush1.msra.mxu0 0.0
        %575 = vmatprep.mubr.f32.mxu0 0.0
        %576 = vmatmul.mubr.f32.gmra.mrb[0].mxu0 %v506
        %v577 = vpop.f32.mrb[0].mxu0
        %v578 = vadd.f32 %v503, %v577
        %v579 = vpop.f32.mrb[0].mxu0
        %580 = vdwg.mxu0
        %581 = vrot.lane.b32.xlu0 %v421, 127
        %v582 = vpop.permute.xlu0 %581
        %v583 = vmul.f32 %v582, %v412
        %v584 = vld [vmem:[#allocation8] sm:$0xff]
        %586 = vrot.lane.b32.xlu0 %v584, 120
        %v587 = vpop.permute.xlu0 %586
        %v588 = vsel %vm430, %v587, 0
        %v591 = vsel %vm433, %v583, 0
        %593 = vmatprep.subr.mxu0 0.0
        %594 = vmatpush1.msra.mxu0 %v591
        %595 = vmatprep.subr.mxu0 0.0
        %596 = vmatpush1.msra.mxu0 0.0
        %597 = vmatprep.subr.mxu0 0.0
        %598 = vmatpush1.msra.mxu0 0.0
        %599 = vmatprep.subr.mxu0 0.0
        %600 = vmatpush1.msra.mxu0 0.0
        %601 = vmatprep.subr.mxu0 0.0
        %602 = vmatpush1.msra.mxu0 0.0
        %603 = vmatprep.subr.mxu0 0.0
        %604 = vmatpush1.msra.mxu0 0.0
        %605 = vmatprep.subr.mxu0 0.0
        %606 = vmatpush1.msra.mxu0 0.0
        %607 = vmatprep.subr.mxu0 0.0
        %608 = vmatpush1.msra.mxu0 0.0
        %609 = vmatprep.subr.mxu0 0.0
        %610 = vmatpush1.msra.mxu0 0.0
        %611 = vmatprep.subr.mxu0 0.0
        %612 = vmatpush1.msra.mxu0 0.0
        %613 = vmatprep.subr.mxu0 0.0
        %614 = vmatpush1.msra.mxu0 0.0
        %615 = vmatprep.subr.mxu0 0.0
        %616 = vmatpush1.msra.mxu0 0.0
        %617 = vmatprep.subr.mxu0 0.0
        %618 = vmatpush1.msra.mxu0 0.0
        %619 = vmatprep.subr.mxu0 0.0
        %620 = vmatpush1.msra.mxu0 0.0
        %621 = vmatprep.subr.mxu0 0.0
        %622 = vmatpush1.msra.mxu0 0.0
        %623 = vmatprep.subr.mxu0 0.0
        %624 = vmatpush1.msra.mxu0 0.0
        %625 = vmatprep.subr.mxu0 0.0
        %626 = vmatpush1.msra.mxu0 0.0
        %627 = vmatprep.subr.mxu0 0.0
        %628 = vmatpush1.msra.mxu0 0.0
        %629 = vmatprep.subr.mxu0 0.0
        %630 = vmatpush1.msra.mxu0 0.0
        %631 = vmatprep.subr.mxu0 0.0
        %632 = vmatpush1.msra.mxu0 0.0
        %633 = vmatprep.subr.mxu0 0.0
        %634 = vmatpush1.msra.mxu0 0.0
        %635 = vmatprep.subr.mxu0 0.0
        %636 = vmatpush1.msra.mxu0 0.0
        %637 = vmatprep.subr.mxu0 0.0
        %638 = vmatpush1.msra.mxu0 0.0
        %639 = vmatprep.subr.mxu0 0.0
        %640 = vmatpush1.msra.mxu0 0.0
        %641 = vmatprep.subr.mxu0 0.0
        %642 = vmatpush1.msra.mxu0 0.0
        %643 = vmatprep.subr.mxu0 0.0
        %644 = vmatpush1.msra.mxu0 0.0
        %645 = vmatprep.subr.mxu0 0.0
        %646 = vmatpush1.msra.mxu0 0.0
        %647 = vmatprep.subr.mxu0 0.0
        %648 = vmatpush1.msra.mxu0 0.0
        %649 = vmatprep.subr.mxu0 0.0
        %650 = vmatpush1.msra.mxu0 0.0
        %651 = vmatprep.subr.mxu0 0.0
        %652 = vmatpush1.msra.mxu0 0.0
        %653 = vmatprep.subr.mxu0 0.0
        %654 = vmatpush1.msra.mxu0 0.0
        %655 = vmatprep.subr.mxu0 0.0
        %656 = vmatpush1.msra.mxu0 0.0
        %657 = vmatprep.mubr.f32.mxu0 0.0
        %658 = vmatmul.mubr.f32.gmra.mrb[0].mxu0 %v588
        %v659 = vpop.f32.mrb[0].mxu0
        %v660 = vadd.f32 0.0, %v659
        %v661 = vpop.f32.mrb[0].mxu0
        %662 = vdwg.mxu0
        %v663 = vadd.f32 %v578, %v660
        %664 = vrot.lane.b32.xlu0 %v375, 1
        %v665 = vpop.permute.xlu0 %664
        %v666 = vmul.f32 %v665, %v409
        %667 = vrot.lane.b32.xlu0 %v584, 116
        %v668 = vpop.permute.xlu0 %667
        %v669 = vsel %vm430, %v668, 0
        %v672 = vsel %vm433, %v666, 0
        %674 = vmatprep.subr.mxu0 0.0
        %675 = vmatpush1.msra.mxu0 %v672
        %676 = vmatprep.subr.mxu0 0.0
        %677 = vmatpush1.msra.mxu0 0.0
        %678 = vmatprep.subr.mxu0 0.0
        %679 = vmatpush1.msra.mxu0 0.0
        %680 = vmatprep.subr.mxu0 0.0
        %681 = vmatpush1.msra.mxu0 0.0
        %682 = vmatprep.subr.mxu0 0.0
        %683 = vmatpush1.msra.mxu0 0.0
        %684 = vmatprep.subr.mxu0 0.0
        %685 = vmatpush1.msra.mxu0 0.0
        %686 = vmatprep.subr.mxu0 0.0
        %687 = vmatpush1.msra.mxu0 0.0
        %688 = vmatprep.subr.mxu0 0.0
        %689 = vmatpush1.msra.mxu0 0.0
        %690 = vmatprep.subr.mxu0 0.0
        %691 = vmatpush1.msra.mxu0 0.0
        %692 = vmatprep.subr.mxu0 0.0
        %693 = vmatpush1.msra.mxu0 0.0
        %694 = vmatprep.subr.mxu0 0.0
        %695 = vmatpush1.msra.mxu0 0.0
        %696 = vmatprep.subr.mxu0 0.0
        %697 = vmatpush1.msra.mxu0 0.0
        %698 = vmatprep.subr.mxu0 0.0
        %699 = vmatpush1.msra.mxu0 0.0
        %700 = vmatprep.subr.mxu0 0.0
        %701 = vmatpush1.msra.mxu0 0.0
        %702 = vmatprep.subr.mxu0 0.0
        %703 = vmatpush1.msra.mxu0 0.0
        %704 = vmatprep.subr.mxu0 0.0
        %705 = vmatpush1.msra.mxu0 0.0
        %706 = vmatprep.subr.mxu0 0.0
        %707 = vmatpush1.msra.mxu0 0.0
        %708 = vmatprep.subr.mxu0 0.0
        %709 = vmatpush1.msra.mxu0 0.0
        %710 = vmatprep.subr.mxu0 0.0
        %711 = vmatpush1.msra.mxu0 0.0
        %712 = vmatprep.subr.mxu0 0.0
        %713 = vmatpush1.msra.mxu0 0.0
        %714 = vmatprep.subr.mxu0 0.0
        %715 = vmatpush1.msra.mxu0 0.0
        %716 = vmatprep.subr.mxu0 0.0
        %717 = vmatpush1.msra.mxu0 0.0
        %718 = vmatprep.subr.mxu0 0.0
        %719 = vmatpush1.msra.mxu0 0.0
        %720 = vmatprep.subr.mxu0 0.0
        %721 = vmatpush1.msra.mxu0 0.0
        %722 = vmatprep.subr.mxu0 0.0
        %723 = vmatpush1.msra.mxu0 0.0
        %724 = vmatprep.subr.mxu0 0.0
        %725 = vmatpush1.msra.mxu0 0.0
        %726 = vmatprep.subr.mxu0 0.0
        %727 = vmatpush1.msra.mxu0 0.0
        %728 = vmatprep.subr.mxu0 0.0
        %729 = vmatpush1.msra.mxu0 0.0
        %730 = vmatprep.subr.mxu0 0.0
        %731 = vmatpush1.msra.mxu0 0.0
        %732 = vmatprep.subr.mxu0 0.0
        %733 = vmatpush1.msra.mxu0 0.0
        %734 = vmatprep.subr.mxu0 0.0
        %735 = vmatpush1.msra.mxu0 0.0
        %736 = vmatprep.subr.mxu0 0.0
        %737 = vmatpush1.msra.mxu0 0.0
        %738 = vmatprep.mubr.f32.mxu0 0.0
        %739 = vmatmul.mubr.f32.gmra.mrb[0].mxu0 %v669
        %v740 = vpop.f32.mrb[0].mxu0
        %v741 = vadd.f32 0.0, %v740
        %v742 = vpop.f32.mrb[0].mxu0
        %743 = vdwg.mxu0
        %v744 = vadd.f32 %v663, %v741
        %745 = vrot.lane.b32.xlu0 %v584, 112
        %v746 = vpop.permute.xlu0 %745
        %v747 = vsel %vm430, %v746, 0
        %v750 = vsel %vm433, %v375, 0
        %752 = vmatprep.subr.mxu0 0.0
        %753 = vmatpush1.msra.mxu0 %v750
        %754 = vmatprep.subr.mxu0 0.0
        %755 = vmatpush1.msra.mxu0 0.0
        %756 = vmatprep.subr.mxu0 0.0
        %757 = vmatpush1.msra.mxu0 0.0
        %758 = vmatprep.subr.mxu0 0.0
        %759 = vmatpush1.msra.mxu0 0.0
        %760 = vmatprep.subr.mxu0 0.0
        %761 = vmatpush1.msra.mxu0 0.0
        %762 = vmatprep.subr.mxu0 0.0
        %763 = vmatpush1.msra.mxu0 0.0
        %764 = vmatprep.subr.mxu0 0.0
        %765 = vmatpush1.msra.mxu0 0.0
        %766 = vmatprep.subr.mxu0 0.0
        %767 = vmatpush1.msra.mxu0 0.0
        %768 = vmatprep.subr.mxu0 0.0
        %769 = vmatpush1.msra.mxu0 0.0
        %770 = vmatprep.subr.mxu0 0.0
        %771 = vmatpush1.msra.mxu0 0.0
        %772 = vmatprep.subr.mxu0 0.0
        %773 = vmatpush1.msra.mxu0 0.0
        %774 = vmatprep.subr.mxu0 0.0
        %775 = vmatpush1.msra.mxu0 0.0
        %776 = vmatprep.subr.mxu0 0.0
        %777 = vmatpush1.msra.mxu0 0.0
        %778 = vmatprep.subr.mxu0 0.0
        %779 = vmatpush1.msra.mxu0 0.0
        %780 = vmatprep.subr.mxu0 0.0
        %781 = vmatpush1.msra.mxu0 0.0
        %782 = vmatprep.subr.mxu0 0.0
        %783 = vmatpush1.msra.mxu0 0.0
        %784 = vmatprep.subr.mxu0 0.0
        %785 = vmatpush1.msra.mxu0 0.0
        %786 = vmatprep.subr.mxu0 0.0
        %787 = vmatpush1.msra.mxu0 0.0
        %788 = vmatprep.subr.mxu0 0.0
        %789 = vmatpush1.msra.mxu0 0.0
        %790 = vmatprep.subr.mxu0 0.0
        %791 = vmatpush1.msra.mxu0 0.0
        %792 = vmatprep.subr.mxu0 0.0
        %793 = vmatpush1.msra.mxu0 0.0
        %794 = vmatprep.subr.mxu0 0.0
        %795 = vmatpush1.msra.mxu0 0.0
        %796 = vmatprep.subr.mxu0 0.0
        %797 = vmatpush1.msra.mxu0 0.0
        %798 = vmatprep.subr.mxu0 0.0
        %799 = vmatpush1.msra.mxu0 0.0
        %800 = vmatprep.subr.mxu0 0.0
        %801 = vmatpush1.msra.mxu0 0.0
        %802 = vmatprep.subr.mxu0 0.0
        %803 = vmatpush1.msra.mxu0 0.0
        %804 = vmatprep.subr.mxu0 0.0
        %805 = vmatpush1.msra.mxu0 0.0
        %806 = vmatprep.subr.mxu0 0.0
        %807 = vmatpush1.msra.mxu0 0.0
        %808 = vmatprep.subr.mxu0 0.0
        %809 = vmatpush1.msra.mxu0 0.0
        %810 = vmatprep.subr.mxu0 0.0
        %811 = vmatpush1.msra.mxu0 0.0
        %812 = vmatprep.subr.mxu0 0.0
        %813 = vmatpush1.msra.mxu0 0.0
        %814 = vmatprep.subr.mxu0 0.0
        %815 = vmatpush1.msra.mxu0 0.0
        %816 = vmatprep.mubr.f32.mxu0 0.0
        %817 = vmatmul.mubr.f32.gmra.mrb[0].mxu0 %v747
        %v818 = vpop.f32.mrb[0].mxu0
        %v819 = vadd.f32 0.0, %v818
        %v820 = vpop.f32.mrb[0].mxu0
        %821 = vdwg.mxu0
        %v822 = vadd.f32 %v744, %v819
        %823 = vrot.lane.b32.xlu0 %v375, 127
        %v824 = vpop.permute.xlu0 %823
        %v825 = vmul.f32 %v824, %v412
        %826 = vrot.lane.b32.xlu0 %v584, 108
        %v827 = vpop.permute.xlu0 %826
        %v828 = vsel %vm430, %v827, 0
        %v831 = vsel %vm433, %v825, 0
        %833 = vmatprep.subr.mxu0 0.0
        %834 = vmatpush1.msra.mxu0 %v831
        %835 = vmatprep.subr.mxu0 0.0
        %836 = vmatpush1.msra.mxu0 0.0
        %837 = vmatprep.subr.mxu0 0.0
        %838 = vmatpush1.msra.mxu0 0.0
        %839 = vmatprep.subr.mxu0 0.0
        %840 = vmatpush1.msra.mxu0 0.0
        %841 = vmatprep.subr.mxu0 0.0
        %842 = vmatpush1.msra.mxu0 0.0
        %843 = vmatprep.subr.mxu0 0.0
        %844 = vmatpush1.msra.mxu0 0.0
        %845 = vmatprep.subr.mxu0 0.0
        %846 = vmatpush1.msra.mxu0 0.0
        %847 = vmatprep.subr.mxu0 0.0
        %848 = vmatpush1.msra.mxu0 0.0
        %849 = vmatprep.subr.mxu0 0.0
        %850 = vmatpush1.msra.mxu0 0.0
        %851 = vmatprep.subr.mxu0 0.0
        %852 = vmatpush1.msra.mxu0 0.0
        %853 = vmatprep.subr.mxu0 0.0
        %854 = vmatpush1.msra.mxu0 0.0
        %855 = vmatprep.subr.mxu0 0.0
        %856 = vmatpush1.msra.mxu0 0.0
        %857 = vmatprep.subr.mxu0 0.0
        %858 = vmatpush1.msra.mxu0 0.0
        %859 = vmatprep.subr.mxu0 0.0
        %860 = vmatpush1.msra.mxu0 0.0
        %861 = vmatprep.subr.mxu0 0.0
        %862 = vmatpush1.msra.mxu0 0.0
        %863 = vmatprep.subr.mxu0 0.0
        %864 = vmatpush1.msra.mxu0 0.0
        %865 = vmatprep.subr.mxu0 0.0
        %866 = vmatpush1.msra.mxu0 0.0
        %867 = vmatprep.subr.mxu0 0.0
        %868 = vmatpush1.msra.mxu0 0.0
        %869 = vmatprep.subr.mxu0 0.0
        %870 = vmatpush1.msra.mxu0 0.0
        %871 = vmatprep.subr.mxu0 0.0
        %872 = vmatpush1.msra.mxu0 0.0
        %873 = vmatprep.subr.mxu0 0.0
        %874 = vmatpush1.msra.mxu0 0.0
        %875 = vmatprep.subr.mxu0 0.0
        %876 = vmatpush1.msra.mxu0 0.0
        %877 = vmatprep.subr.mxu0 0.0
        %878 = vmatpush1.msra.mxu0 0.0
        %879 = vmatprep.subr.mxu0 0.0
        %880 = vmatpush1.msra.mxu0 0.0
        %881 = vmatprep.subr.mxu0 0.0
        %882 = vmatpush1.msra.mxu0 0.0
        %883 = vmatprep.subr.mxu0 0.0
        %884 = vmatpush1.msra.mxu0 0.0
        %885 = vmatprep.subr.mxu0 0.0
        %886 = vmatpush1.msra.mxu0 0.0
        %887 = vmatprep.subr.mxu0 0.0
        %888 = vmatpush1.msra.mxu0 0.0
        %889 = vmatprep.subr.mxu0 0.0
        %890 = vmatpush1.msra.mxu0 0.0
        %891 = vmatprep.subr.mxu0 0.0
        %892 = vmatpush1.msra.mxu0 0.0
        %893 = vmatprep.subr.mxu0 0.0
        %894 = vmatpush1.msra.mxu0 0.0
        %895 = vmatprep.subr.mxu0 0.0
        %896 = vmatpush1.msra.mxu0 0.0
        %897 = vmatprep.mubr.f32.mxu0 0.0
        %898 = vmatmul.mubr.f32.gmra.mrb[0].mxu0 %v828
        %v899 = vpop.f32.mrb[0].mxu0
        %v900 = vadd.f32 0.0, %v899
        %v901 = vpop.f32.mrb[0].mxu0
        %902 = vdwg.mxu0
        %v903 = vadd.f32 %v822, %v900
        %v904 = vld [vmem:[#allocation2 + $0x4] sm:$0xff]
        %v906 = vcombine.high %v904, %v904
        %907 = vrot.lane.b32.xlu0 %v904, 112
        %v908 = vpop.permute.xlu0 %907
        %909 = vrot.lane.b32.xlu0 %v906, 112
        %v910 = vpop.permute.xlu0 %909
        %vm911 = vcmask 916480
        %v912 = vsel %vm911, %v908, %v910
        %914 = vrot.lane.b32.xlu0 %v912, 1
        %v915 = vpop.permute.xlu0 %914
        %v916 = vmul.f32 %v915, %v409
        %v917 = vld [vmem:[#allocation8] sm:$0xff]
        %919 = vrot.lane.b32.xlu0 %v917, 104
        %v920 = vpop.permute.xlu0 %919
        %v921 = vsel %vm430, %v920, 0
        %v924 = vsel %vm433, %v916, 0
        %926 = vmatprep.subr.mxu0 0.0
        %927 = vmatpush1.msra.mxu0 %v924
        %928 = vmatprep.subr.mxu0 0.0
        %929 = vmatpush1.msra.mxu0 0.0
        %930 = vmatprep.subr.mxu0 0.0
        %931 = vmatpush1.msra.mxu0 0.0
        %932 = vmatprep.subr.mxu0 0.0
        %933 = vmatpush1.msra.mxu0 0.0
        %934 = vmatprep.subr.mxu0 0.0
        %935 = vmatpush1.msra.mxu0 0.0
        %936 = vmatprep.subr.mxu0 0.0
        %937 = vmatpush1.msra.mxu0 0.0
        %938 = vmatprep.subr.mxu0 0.0
        %939 = vmatpush1.msra.mxu0 0.0
        %940 = vmatprep.subr.mxu0 0.0
        %941 = vmatpush1.msra.mxu0 0.0
        %942 = vmatprep.subr.mxu0 0.0
        %943 = vmatpush1.msra.mxu0 0.0
        %944 = vmatprep.subr.mxu0 0.0
        %945 = vmatpush1.msra.mxu0 0.0
        %946 = vmatprep.subr.mxu0 0.0
        %947 = vmatpush1.msra.mxu0 0.0
        %948 = vmatprep.subr.mxu0 0.0
        %949 = vmatpush1.msra.mxu0 0.0
        %950 = vmatprep.subr.mxu0 0.0
        %951 = vmatpush1.msra.mxu0 0.0
        %952 = vmatprep.subr.mxu0 0.0
        %953 = vmatpush1.msra.mxu0 0.0
        %954 = vmatprep.subr.mxu0 0.0
        %955 = vmatpush1.msra.mxu0 0.0
        %956 = vmatprep.subr.mxu0 0.0
        %957 = vmatpush1.msra.mxu0 0.0
        %958 = vmatprep.subr.mxu0 0.0
        %959 = vmatpush1.msra.mxu0 0.0
        %960 = vmatprep.subr.mxu0 0.0
        %961 = vmatpush1.msra.mxu0 0.0
        %962 = vmatprep.subr.mxu0 0.0
        %963 = vmatpush1.msra.mxu0 0.0
        %964 = vmatprep.subr.mxu0 0.0
        %965 = vmatpush1.msra.mxu0 0.0
        %966 = vmatprep.subr.mxu0 0.0
        %967 = vmatpush1.msra.mxu0 0.0
        %968 = vmatprep.subr.mxu0 0.0
        %969 = vmatpush1.msra.mxu0 0.0
        %970 = vmatprep.subr.mxu0 0.0
        %971 = vmatpush1.msra.mxu0 0.0
        %972 = vmatprep.subr.mxu0 0.0
        %973 = vmatpush1.msra.mxu0 0.0
        %974 = vmatprep.subr.mxu0 0.0
        %975 = vmatpush1.msra.mxu0 0.0
        %976 = vmatprep.subr.mxu0 0.0
        %977 = vmatpush1.msra.mxu0 0.0
        %978 = vmatprep.subr.mxu0 0.0
        %979 = vmatpush1.msra.mxu0 0.0
        %980 = vmatprep.subr.mxu0 0.0
        %981 = vmatpush1.msra.mxu0 0.0
        %982 = vmatprep.subr.mxu0 0.0
        %983 = vmatpush1.msra.mxu0 0.0
        %984 = vmatprep.subr.mxu0 0.0
        %985 = vmatpush1.msra.mxu0 0.0
        %986 = vmatprep.subr.mxu0 0.0
        %987 = vmatpush1.msra.mxu0 0.0
        %988 = vmatprep.subr.mxu0 0.0
        %989 = vmatpush1.msra.mxu0 0.0
        %990 = vmatprep.mubr.f32.mxu0 0.0
        %991 = vmatmul.mubr.f32.gmra.mrb[0].mxu0 %v921
        %v992 = vpop.f32.mrb[0].mxu0
        %v993 = vadd.f32 0.0, %v992
        %v994 = vpop.f32.mrb[0].mxu0
        %995 = vdwg.mxu0
        %v996 = vadd.f32 %v903, %v993
        %997 = vrot.lane.b32.xlu0 %v917, 100
        %v998 = vpop.permute.xlu0 %997
        %v999 = vsel %vm430, %v998, 0
        %v1001 = vsel %vm433, %v912, 0
        %1003 = vmatprep.subr.mxu0 0.0
        %1004 = vmatpush1.msra.mxu0 %v1001
        %1005 = vmatprep.subr.mxu0 0.0
        %1006 = vmatpush1.msra.mxu0 0.0
        %1007 = vmatprep.subr.mxu0 0.0
        %1008 = vmatpush1.msra.mxu0 0.0
        %1009 = vmatprep.subr.mxu0 0.0
        %1010 = vmatpush1.msra.mxu0 0.0
        %1011 = vmatprep.subr.mxu0 0.0
        %1012 = vmatpush1.msra.mxu0 0.0
        %1013 = vmatprep.subr.mxu0 0.0
        %1014 = vmatpush1.msra.mxu0 0.0
        %1015 = vmatprep.subr.mxu0 0.0
        %1016 = vmatpush1.msra.mxu0 0.0
        %1017 = vmatprep.subr.mxu0 0.0
        %1018 = vmatpush1.msra.mxu0 0.0
        %1019 = vmatprep.subr.mxu0 0.0
        %1020 = vmatpush1.msra.mxu0 0.0
        %1021 = vmatprep.subr.mxu0 0.0
        %1022 = vmatpush1.msra.mxu0 0.0
        %1023 = vmatprep.subr.mxu0 0.0
        %1024 = vmatpush1.msra.mxu0 0.0
        %1025 = vmatprep.subr.mxu0 0.0
        %1026 = vmatpush1.msra.mxu0 0.0
        %1027 = vmatprep.subr.mxu0 0.0
        %1028 = vmatpush1.msra.mxu0 0.0
        %1029 = vmatprep.subr.mxu0 0.0
        %1030 = vmatpush1.msra.mxu0 0.0
        %1031 = vmatprep.subr.mxu0 0.0
        %1032 = vmatpush1.msra.mxu0 0.0
        %1033 = vmatprep.subr.mxu0 0.0
        %1034 = vmatpush1.msra.mxu0 0.0
        %1035 = vmatprep.subr.mxu0 0.0
        %1036 = vmatpush1.msra.mxu0 0.0
        %1037 = vmatprep.subr.mxu0 0.0
        %1038 = vmatpush1.msra.mxu0 0.0
        %1039 = vmatprep.subr.mxu0 0.0
        %1040 = vmatpush1.msra.mxu0 0.0
        %1041 = vmatprep.subr.mxu0 0.0
        %1042 = vmatpush1.msra.mxu0 0.0
        %1043 = vmatprep.subr.mxu0 0.0
        %1044 = vmatpush1.msra.mxu0 0.0
        %1045 = vmatprep.subr.mxu0 0.0
        %1046 = vmatpush1.msra.mxu0 0.0
        %1047 = vmatprep.subr.mxu0 0.0
        %1048 = vmatpush1.msra.mxu0 0.0
        %1049 = vmatprep.subr.mxu0 0.0
        %1050 = vmatpush1.msra.mxu0 0.0
        %1051 = vmatprep.subr.mxu0 0.0
        %1052 = vmatpush1.msra.mxu0 0.0
        %1053 = vmatprep.subr.mxu0 0.0
        %1054 = vmatpush1.msra.mxu0 0.0
        %1055 = vmatprep.subr.mxu0 0.0
        %1056 = vmatpush1.msra.mxu0 0.0
        %1057 = vmatprep.subr.mxu0 0.0
        %1058 = vmatpush1.msra.mxu0 0.0
        %1059 = vmatprep.subr.mxu0 0.0
        %1060 = vmatpush1.msra.mxu0 0.0
        %1061 = vmatprep.subr.mxu0 0.0
        %1062 = vmatpush1.msra.mxu0 0.0
        %1063 = vmatprep.subr.mxu0 0.0
        %1064 = vmatpush1.msra.mxu0 0.0
        %1065 = vmatprep.subr.mxu0 0.0
        %1066 = vmatpush1.msra.mxu0 0.0
        %1067 = vmatprep.mubr.f32.mxu0 0.0
        %1068 = vmatmul.mubr.f32.gmra.mrb[0].mxu0 %v999
        %v1069 = vpop.f32.mrb[0].mxu0
        %v1070 = vadd.f32 0.0, %v1069
        %v1071 = vpop.f32.mrb[0].mxu0
        %1072 = vdwg.mxu0
        %v1073 = vadd.f32 %v996, %v1070
        %1074 = vrot.lane.b32.xlu0 %v912, 127
        %v1075 = vpop.permute.xlu0 %1074
        %v1076 = vmul.f32 %v1075, %v412
        %v1077 = vld [vmem:[#allocation8] sm:$0xff]
        %1079 = vrot.lane.b32.xlu0 %v1077, 96
        %v1080 = vpop.permute.xlu0 %1079
        %v1081 = vsel %vm430, %v1080, 0
        %v1084 = vsel %vm433, %v1076, 0
        %1086 = vmatprep.subr.mxu0 0.0
        %1087 = vmatpush1.msra.mxu0 %v1084
        %1088 = vmatprep.subr.mxu0 0.0
        %1089 = vmatpush1.msra.mxu0 0.0
        %1090 = vmatprep.subr.mxu0 0.0
        %1091 = vmatpush1.msra.mxu0 0.0
        %1092 = vmatprep.subr.mxu0 0.0
        %1093 = vmatpush1.msra.mxu0 0.0
        %1094 = vmatprep.subr.mxu0 0.0
        %1095 = vmatpush1.msra.mxu0 0.0
        %1096 = vmatprep.subr.mxu0 0.0
        %1097 = vmatpush1.msra.mxu0 0.0
        %1098 = vmatprep.subr.mxu0 0.0
        %1099 = vmatpush1.msra.mxu0 0.0
        %1100 = vmatprep.subr.mxu0 0.0
        %1101 = vmatpush1.msra.mxu0 0.0
        %1102 = vmatprep.subr.mxu0 0.0
        %1103 = vmatpush1.msra.mxu0 0.0
        %1104 = vmatprep.subr.mxu0 0.0
        %1105 = vmatpush1.msra.mxu0 0.0
        %1106 = vmatprep.subr.mxu0 0.0
        %1107 = vmatpush1.msra.mxu0 0.0
        %1108 = vmatprep.subr.mxu0 0.0
        %1109 = vmatpush1.msra.mxu0 0.0
        %1110 = vmatprep.subr.mxu0 0.0
        %1111 = vmatpush1.msra.mxu0 0.0
        %1112 = vmatprep.subr.mxu0 0.0
        %1113 = vmatpush1.msra.mxu0 0.0
        %1114 = vmatprep.subr.mxu0 0.0
        %1115 = vmatpush1.msra.mxu0 0.0
        %1116 = vmatprep.subr.mxu0 0.0
        %1117 = vmatpush1.msra.mxu0 0.0
        %1118 = vmatprep.subr.mxu0 0.0
        %1119 = vmatpush1.msra.mxu0 0.0
        %1120 = vmatprep.subr.mxu0 0.0
        %1121 = vmatpush1.msra.mxu0 0.0
        %1122 = vmatprep.subr.mxu0 0.0
        %1123 = vmatpush1.msra.mxu0 0.0
        %1124 = vmatprep.subr.mxu0 0.0
        %1125 = vmatpush1.msra.mxu0 0.0
        %1126 = vmatprep.subr.mxu0 0.0
        %1127 = vmatpush1.msra.mxu0 0.0
        %1128 = vmatprep.subr.mxu0 0.0
        %1129 = vmatpush1.msra.mxu0 0.0
        %1130 = vmatprep.subr.mxu0 0.0
        %1131 = vmatpush1.msra.mxu0 0.0
        %1132 = vmatprep.subr.mxu0 0.0
        %1133 = vmatpush1.msra.mxu0 0.0
        %1134 = vmatprep.subr.mxu0 0.0
        %1135 = vmatpush1.msra.mxu0 0.0
        %1136 = vmatprep.subr.mxu0 0.0
        %1137 = vmatpush1.msra.mxu0 0.0
        %1138 = vmatprep.subr.mxu0 0.0
        %1139 = vmatpush1.msra.mxu0 0.0
        %1140 = vmatprep.subr.mxu0 0.0
        %1141 = vmatpush1.msra.mxu0 0.0
        %1142 = vmatprep.subr.mxu0 0.0
        %1143 = vmatpush1.msra.mxu0 0.0
        %1144 = vmatprep.subr.mxu0 0.0
        %1145 = vmatpush1.msra.mxu0 0.0
        %1146 = vmatprep.subr.mxu0 0.0
        %1147 = vmatpush1.msra.mxu0 0.0
        %1148 = vmatprep.subr.mxu0 0.0
        %1149 = vmatpush1.msra.mxu0 0.0
        %1150 = vmatprep.mubr.f32.mxu0 0.0
        %1151 = vmatmul.mubr.f32.gmra.mrb[0].mxu0 %v1081
        %v1152 = vpop.f32.mrb[0].mxu0
        %v1153 = vadd.f32 0.0, %v1152
        %v1154 = vpop.f32.mrb[0].mxu0
        %1155 = vdwg.mxu0
        %v1156 = vadd.f32 %v1073, %v1153
        %v1157 = vld [vmem:[%s4] sm:$0xff]
        %1159 = vset.pattern.permute.xlu0 0
        %1160 = vperm.xlu0 %1159, %v1157
        %v1161 = vpop.permute.xlu0 %1160
        %v1163 = vadd.f32 %v1156, %v1161
        %v1164 = vmax.f32 %v1163, 0.0
        %1165 = vst [vmem:[%s357] sm:$0xff] %v1164
        %s1166 = sand.u32 %s185, 1
        %s1167 = scalar_lea.sflag [#allocation5], %s1166
        %s1168 = sand.u32 %s185, 1
        %s1169 = smul.addr %s1168, 8
        %s1170 = scalar_lea.vmem [#allocation9], %s1169
        // Predicated region
        $region53: #{tpu_custom_call.1} parent=39 // pred_check
          %p1171 = pneg %p195
        $region54: #{tpu_custom_call.1} parent=39 // pred_check_branch
          %1173 = sbr.rel (%p1171) target = $region56
        $region55: #{tpu_custom_call.1} parent=39 // pred_region
          %s1175 = ssub.s32 128, 128
          %1176 = vsyncadd %s1167, %s1175
          %s1177 = smul.addr %s29, 2
          %s1178 = sadd.s32 %s30, %s1177
          %s1179 = smul.addr %s1178, 128
          %s1180 = scalar_lea.hbm %s5, %s1179
          %s1182 = sshll.u32 %s1170, 4
          %s1183 = int_to_ptr.vmem [resolvable:$true] %s1182
          %1185 = dma.vmem_to_hbm [thread:$0]  %s1183, 128, %s1180, %s1167
        $region56: #{tpu_custom_call.1} parent=39 // pred_fallthru
          _
      $region40: #{tpu_custom_call.1} parent=5 // pred_fallthru
        _
      %p1186 = scmp.le.s32.totalorder 2, %s20
      // Predicated region
      $region57: #{tpu_custom_call.1} parent=5 // pred_check
        %p1187 = pneg %p1186
      $region58: #{tpu_custom_call.1} parent=5 // pred_check_branch
        %1189 = sbr.rel (%p1187) target = $region60
      $region59: #{tpu_custom_call.1} parent=5 // pred_region
        %s1190 = ssub.s32 %s20, 2
        // Predicated region
        $region61: #{tpu_custom_call.1} parent=59 // pred_check
          %p1191 = pneg %p201
        $region62: #{tpu_custom_call.1} parent=59 // pred_check_branch
          %1193 = sbr.rel (%p1191) target = $region64
        $region63: #{tpu_custom_call.1} parent=59 // pred_region
          %s1194 = sand.u32 %s186, 1
          %s1195 = scalar_lea.sflag [#allocation5], %s1194
          %s1196 = sand.u32 %s186, 1
          %s1197 = smul.addr %s1196, 8
          %s1198 = scalar_lea.vmem [#allocation9], %s1197
          %1199 = dma.done %s1195, 128
        $region64: #{tpu_custom_call.1} parent=59 // pred_fallthru
          _
      $region60: #{tpu_custom_call.1} parent=5 // pred_fallthru
        _
    $region6: #{tpu_custom_call.1} parent=1 // loop_footer
      %s24 = sadd.s32 1, %s20
    $region7: #{tpu_custom_call.1} parent=1 // loop_footer_branch
      %19 = sbr.rel target = $region3
    $region8: #{tpu_custom_call.1} parent=1 // loop_exit
      _
    %1200 = vsyncpa [#allocation4], 1
    %s1201 = scalar_lea.sflag [#allocation4], 1
    %1202 = vsyncpa %s1201, 1
    %1203 = vsyncpa [#allocation7], 1
    %s1204 = scalar_lea.sflag [#allocation7], 1
    %1205 = vsyncpa %s1204, 1
    %1206 = vsyncpa [#allocation5], 1
    %s1207 = scalar_lea.sflag [#allocation5], 1
    %1208 = vsyncpa %s1207, 1

</llo_original>
